<compile_context>
chip_gen: v7x
topology: tpu7x:2x2x1
jax: 0.10.0
libtpu: 0.0.40
codegen_flags: <defaults>
</compile_context>

<pallas_src>
import jax
import jax.numpy as jnp
from jax import lax
from jax.experimental import pallas as pl
from jax.experimental.pallas import tpu as pltpu


def _round_up(x, m):
    return (x + m - 1) // m * m


def _pad2(a, rows, cols):
    """Zero-pad a 2D array up to (rows, cols)."""
    return jnp.pad(a, ((0, rows - a.shape[0]), (0, cols - a.shape[1])))


def seq2seq_forward(src, params, *, batch_tile=8):
    """src: (S, B, I) float32 -> (S, B, O) float32."""
    S, B, I = src.shape
    H = params["whh_e"].shape[0]
    O = params["wout"].shape[1]

    LANE, SUB = 128, 8
    Hp = _round_up(H, LANE)                 # lane-dense hidden
    Op = _round_up(O, LANE)                 # lane-dense output head
    tb = max(SUB, _round_up(batch_tile, SUB))   # sublane-aligned batch tile
    Bp = _round_up(B, tb)
    nb = Bp // tb

    f32, bf16 = jnp.float32, jnp.bfloat16

    # ---- wrapper-side padding / layout plumbing (pure XLA, outside kernel) ----
    # Zero-padding H/O is exact: padded hidden columns stay 0 through tanh and
    # never leak into valid columns (padded weight rows/cols are 0).
    wih_e = _pad2(params["wih_e"].astype(f32), I, Hp).astype(bf16)   # MXU input side
    whh_e = _pad2(params["whh_e"].astype(f32), Hp, Hp)               # recurrent, f32
    b_e = _pad2(params["b_e"].astype(f32), 1, Hp)
    wih_d = _pad2(params["wih_d"].astype(f32), Hp, Hp).astype(bf16)
    whh_d = _pad2(params["whh_d"].astype(f32), Hp, Hp)
    b_d = _pad2(params["b_d"].astype(f32), 1, Hp)
    wout = _pad2(params["wout"].astype(f32), Hp, Op).astype(bf16)
    bout = _pad2(params["bout"].astype(f32), 1, Op)

    # Pad batch and lay out per-tile flattened: (nb, S*tb, I), row = t*tb + b.
    # The kernel never reshapes (reshapes inside the kernel materialize VMEM copies).
    src_p = jnp.pad(src.astype(f32), ((0, 0), (0, Bp - B), (0, 0)))
    src_p = (src_p.reshape(S, nb, tb, I)
             .transpose(1, 0, 2, 3)
             .reshape(nb, S * tb, I)
             .astype(bf16))

    unroll = min(S, 8)  # cap unroll: EUP/MXU overlap without vreg spills

    def kernel(src_ref,      # (S*tb, I)   bf16
               wih_e_ref,    # (I, Hp)     bf16
               whh_e_ref,    # (Hp, Hp)    f32
               b_e_ref,      # (1, Hp)     f32
               wih_d_ref,    # (Hp, Hp)    bf16
               whh_d_ref,    # (Hp, Hp)    f32
               b_d_ref,      # (1, Hp)     f32
               wout_ref,     # (Hp, Op)    bf16
               bout_ref,     # (1, Op)     f32
               out_ref,      # (S*tb, Op)  f32
               seq_scr):     # (S*tb, Hp)  f32, reused precomp/hidden buffer
        # ---------------- encoder ----------------
        # Hoisted input projection for ALL timesteps: one bf16 MXU matmul, f32 acc.
        seq_scr[...] = (
            jnp.dot(src_ref[...], wih_e_ref[...],
                    preferred_element_type=jnp.float32)
            + b_e_ref[...])

        whh_e = whh_e_ref[...]                      # read recurrent weight once
        h0 = jnp.zeros((tb, Hp), jnp.float32)

        def enc_step(t, h):                         # h carried in vregs
            row = pl.multiple_of(t * tb, tb)
            h_new = jnp.tanh(
                seq_scr[pl.ds(row, tb), :]
                + jnp.dot(h, whh_e, preferred_element_type=jnp.float32))
            seq_scr[pl.ds(row, tb), :] = h_new      # overwrite consumed slot in place
            return h_new

        lax.fori_loop(0, S, enc_step, h0, unroll=unroll)

        # ---------------- decoder ----------------
        # Hoisted decoder-input projection of all encoder outputs (bf16 MXU).
        seq_scr[...] = (
            jnp.dot(seq_scr[...].astype(jnp.bfloat16), wih_d_ref[...],
                    preferred_element_type=jnp.float32)
            + b_d_ref[...])

        whh_d = whh_d_ref[...]

        def dec_step(t, h):
            row = pl.multiple_of(t * tb, tb)
            h_new = jnp.tanh(
                seq_scr[pl.ds(row, tb), :]
                + jnp.dot(h, whh_d, preferred_element_type=jnp.float32))
            seq_scr[pl.ds(row, tb), :] = h_new
            return h_new

        lax.fori_loop(0, S, dec_step, h0, unroll=unroll)

        # ---------------- output head ----------------
        # One bf16 MXU matmul + a single lane-dense (Op = multiple of 128) store.
        out_ref[...] = (
            jnp.dot(seq_scr[...].astype(jnp.bfloat16), wout_ref[...],
                    preferred_element_type=jnp.float32)
            + bout_ref[...]).astype(out_ref.dtype)

    const2 = lambda i: (0, 0)
    grid_spec = pltpu.PrefetchScalarGridSpec(
        num_scalar_prefetch=0,
        grid=(nb,),
        in_specs=[
            pl.BlockSpec((None, S * tb, I), lambda i: (i, 0, 0)),   # src tile
            pl.BlockSpec((I, Hp), const2),
            pl.BlockSpec((Hp, Hp), const2),
            pl.BlockSpec((1, Hp), const2),
            pl.BlockSpec((Hp, Hp), const2),
            pl.BlockSpec((Hp, Hp), const2),
            pl.BlockSpec((1, Hp), const2),
            pl.BlockSpec((Hp, Op), const2),
            pl.BlockSpec((1, Op), const2),
        ],
        out_specs=pl.BlockSpec((None, S * tb, Op), lambda i: (i, 0, 0)),
        scratch_shapes=[pltpu.VMEM((S * tb, Hp), jnp.float32)],
    )

    out = pl.pallas_call(
        kernel,
        out_shape=jax.ShapeDtypeStruct((nb, S * tb, Op), jnp.float32),
        grid_spec=grid_spec,
        compiler_params=pltpu.CompilerParams(
            dimension_semantics=("parallel",),          # batch tiles across TCs (v7x)
            vmem_limit_bytes=48 * 1024 * 1024),         # explicit: fits v7x 64 MiB
    )(src_p, wih_e, whh_e, b_e, wih_d, whh_d, b_d, wout, bout)

    # Un-tile and strip padding in the wrapper (layout plumbing only).
    out = (out.reshape(nb, S, tb, Op)
           .transpose(1, 0, 2, 3)
           .reshape(S, Bp, Op))
    return out[:, :B, :O]


def _reference(src, p):
    """Pure-JAX f32 reference for correctness check."""
    S, B, _ = src.shape
    H = p["wih_e"].shape[1]
    h = jnp.zeros((B, H), jnp.float32)
    enc = []
    for t in range(S):
        h = jnp.tanh(src[t] @ p["wih_e"] + h @ p["whh_e"] + p["b_e"])
        enc.append(h)
    h = jnp.zeros((B, H), jnp.float32)
    outs = []
    for t in range(S):
        h = jnp.tanh(enc[t] @ p["wih_d"] + h @ p["whh_d"] + p["b_d"])
        outs.append(h @ p["wout"] + p["bout"])
    return jnp.stack(outs, axis=0)


if __name__ == "__main__":
    S, B, I, H, O = 8, 2, 16, 32, 16

    key = jax.random.PRNGKey(0)
    ks = jax.random.split(key, 9)
    scale = 0.1
    params = {
        "wih_e": scale * jax.random.normal(ks[0], (I, H), jnp.float32),
        "whh_e": scale * jax.random.normal(ks[1], (H, H), jnp.float32),
        "b_e":   scale * jax.random.normal(ks[2], (1, H), jnp.float32),
        "wih_d": scale * jax.random.normal(ks[3], (H, H), jnp.float32),
        "whh_d": scale * jax.random.normal(ks[4], (H, H), jnp.float32),
        "b_d":   scale * jax.random.normal(ks[5], (1, H), jnp.float32),
        "wout":  scale * jax.random.normal(ks[6], (H, O), jnp.float32),
        "bout":  scale * jax.random.normal(ks[7], (1, O), jnp.float32),
    }
    src = jax.random.normal(ks[8], (S, B, I), jnp.float32)

    out = seq2seq_forward(src, params)
    out = jax.block_until_ready(out)

    ref = _reference(src, params)
    assert out.shape == (S, B, O)
    # bf16 MXU inputs (f32 accumulation) -> loosened tolerance vs f32 reference.
    assert jnp.allclose(out, ref, atol=2e-2, rtol=2e-2), "mismatch vs reference"

    print("KERNEL_OK")
</pallas_src>

<mosaic_0001>
module attributes {stable_mosaic.version = 11 : i64} {
  func.func @kernel(%arg0: i32, %arg1: memref<1x64x16xbf16, #tpu.memory_space<vmem>>, %arg2: memref<16x128xbf16, #tpu.memory_space<vmem>>, %arg3: memref<128x128xf32, #tpu.memory_space<vmem>>, %arg4: memref<1x128xf32, #tpu.memory_space<vmem>>, %arg5: memref<128x128xbf16, #tpu.memory_space<vmem>>, %arg6: memref<128x128xf32, #tpu.memory_space<vmem>>, %arg7: memref<1x128xf32, #tpu.memory_space<vmem>>, %arg8: memref<128x128xbf16, #tpu.memory_space<vmem>>, %arg9: memref<1x128xf32, #tpu.memory_space<vmem>>, %arg10: memref<1x64x128xf32, #tpu.memory_space<vmem>>, %arg11: memref<64x128xf32, #tpu.memory_space<vmem>>) attributes {dimension_semantics = [#tpu.dimension_semantics<parallel>], iteration_bounds = array<i64: 1>, scalar_prefetch = 0 : i64, scratch_operands = 1 : i64, tpu.core_type = #tpu.core_type<tc>, window_params = [{transform_indices = @transform_0, window_bounds = array<i64: 1, 64, 16>}, {pipeline_mode = #tpu.pipeline_mode<synchronous>, transform_indices = @transform_1, window_bounds = array<i64: 16, 128>}, {pipeline_mode = #tpu.pipeline_mode<synchronous>, transform_indices = @transform_2, window_bounds = array<i64: 128, 128>}, {pipeline_mode = #tpu.pipeline_mode<synchronous>, transform_indices = @transform_3, window_bounds = array<i64: 1, 128>}, {pipeline_mode = #tpu.pipeline_mode<synchronous>, transform_indices = @transform_4, window_bounds = array<i64: 128, 128>}, {pipeline_mode = #tpu.pipeline_mode<synchronous>, transform_indices = @transform_5, window_bounds = array<i64: 128, 128>}, {pipeline_mode = #tpu.pipeline_mode<synchronous>, transform_indices = @transform_6, window_bounds = array<i64: 1, 128>}, {pipeline_mode = #tpu.pipeline_mode<synchronous>, transform_indices = @transform_7, window_bounds = array<i64: 128, 128>}, {pipeline_mode = #tpu.pipeline_mode<synchronous>, transform_indices = @transform_8, window_bounds = array<i64: 1, 128>}, {transform_indices = @transform_9, window_bounds = array<i64: 1, 64, 128>}]} {
    %c0 = arith.constant 0 : index
    %c0_0 = arith.constant 0 : index
    %c0_1 = arith.constant 0 : index
    %0 = vector.load %arg1[%c0, %c0_0, %c0_1] : memref<1x64x16xbf16, #tpu.memory_space<vmem>>, vector<1x64x16xbf16>
    %1 = vector.shape_cast %0 : vector<1x64x16xbf16> to vector<64x16xbf16>
    %c0_2 = arith.constant 0 : index
    %c0_3 = arith.constant 0 : index
    %2 = vector.load %arg2[%c0_2, %c0_3] : memref<16x128xbf16, #tpu.memory_space<vmem>>, vector<16x128xbf16>
    %cst = arith.constant dense<0.000000e+00> : vector<64x128xf32>
    %3 = tpu.matmul %1, %2, %cst {dimension_numbers = #tpu.dot_dimension_numbers<[1], [0], [0], [1], [0, 0, 1, 1], [], []>} : vector<64x16xbf16>, vector<16x128xbf16>, vector<64x128xf32> -> vector<64x128xf32>
    %c0_4 = arith.constant 0 : index
    %c0_5 = arith.constant 0 : index
    %4 = vector.load %arg4[%c0_4, %c0_5] : memref<1x128xf32, #tpu.memory_space<vmem>>, vector<1x128xf32>
    %5 = vector.broadcast %4 : vector<1x128xf32> to vector<64x128xf32>
    %6 = arith.addf %3, %5 : vector<64x128xf32>
    %c0_6 = arith.constant 0 : index
    %c0_7 = arith.constant 0 : index
    %7 = vector.load %arg11[%c0_6, %c0_7] : memref<64x128xf32, #tpu.memory_space<vmem>>, vector<64x128xf32>
    tpu.vector_store %arg11[%c0_6, %c0_7], %6 {strides = array<i32>} : memref<64x128xf32, #tpu.memory_space<vmem>>, vector<64x128xf32>,
    %c0_8 = arith.constant 0 : index
    %c0_9 = arith.constant 0 : index
    %8 = vector.load %arg3[%c0_8, %c0_9] : memref<128x128xf32, #tpu.memory_space<vmem>>, vector<128x128xf32>
    %cst_10 = arith.constant 0.000000e+00 : f32
    %9 = vector.broadcast %cst_10 : f32 to vector<8x128xf32>
    %c0_i32 = arith.constant 0 : i32
    %c8_i32 = arith.constant 8 : i32
    %10 = arith.muli %c0_i32, %c8_i32 : i32
    %11 = tpu.assume_multiple %10, 8 : i32
    %12 = arith.index_cast %11 : i32 to index
    %c0_11 = arith.constant 0 : index
    %13 = vector.load %arg11[%12, %c0_11] : memref<64x128xf32, #tpu.memory_space<vmem>>, vector<8x128xf32>
    %cst_12 = arith.constant dense<0.000000e+00> : vector<8x128xf32>
    %14 = tpu.matmul %9, %8, %cst_12 {dimension_numbers = #tpu.dot_dimension_numbers<[1], [0], [0], [1], [0, 0, 1, 1], [], []>} : vector<8x128xf32>, vector<128x128xf32>, vector<8x128xf32> -> vector<8x128xf32>
    %15 = arith.addf %13, %14 : vector<8x128xf32>
    %16 = math.tanh %15 : vector<8x128xf32>
    %17 = arith.index_cast %11 : i32 to index
    %c0_13 = arith.constant 0 : index
    %18 = vector.load %arg11[%17, %c0_13] : memref<64x128xf32, #tpu.memory_space<vmem>>, vector<8x128xf32>
    tpu.vector_store %arg11[%17, %c0_13], %16 {strides = array<i32>} : memref<64x128xf32, #tpu.memory_space<vmem>>, vector<8x128xf32>,
    %c1_i32 = arith.constant 1 : i32
    %c8_i32_14 = arith.constant 8 : i32
    %19 = arith.muli %c1_i32, %c8_i32_14 : i32
    %20 = tpu.assume_multiple %19, 8 : i32
    %21 = arith.index_cast %20 : i32 to index
    %c0_15 = arith.constant 0 : index
    %22 = vector.load %arg11[%21, %c0_15] : memref<64x128xf32, #tpu.memory_space<vmem>>, vector<8x128xf32>
    %cst_16 = arith.constant dense<0.000000e+00> : vector<8x128xf32>
    %23 = tpu.matmul %16, %8, %cst_16 {dimension_numbers = #tpu.dot_dimension_numbers<[1], [0], [0], [1], [0, 0, 1, 1], [], []>} : vector<8x128xf32>, vector<128x128xf32>, vector<8x128xf32> -> vector<8x128xf32>
    %24 = arith.addf %22, %23 : vector<8x128xf32>
    %25 = math.tanh %24 : vector<8x128xf32>
    %26 = arith.index_cast %20 : i32 to index
    %c0_17 = arith.constant 0 : index
    %27 = vector.load %arg11[%26, %c0_17] : memref<64x128xf32, #tpu.memory_space<vmem>>, vector<8x128xf32>
    tpu.vector_store %arg11[%26, %c0_17], %25 {strides = array<i32>} : memref<64x128xf32, #tpu.memory_space<vmem>>, vector<8x128xf32>,
    %c2_i32 = arith.constant 2 : i32
    %c8_i32_18 = arith.constant 8 : i32
    %28 = arith.muli %c2_i32, %c8_i32_18 : i32
    %29 = tpu.assume_multiple %28, 8 : i32
    %30 = arith.index_cast %29 : i32 to index
    %c0_19 = arith.constant 0 : index
    %31 = vector.load %arg11[%30, %c0_19] : memref<64x128xf32, #tpu.memory_space<vmem>>, vector<8x128xf32>
    %cst_20 = arith.constant dense<0.000000e+00> : vector<8x128xf32>
    %32 = tpu.matmul %25, %8, %cst_20 {dimension_numbers = #tpu.dot_dimension_numbers<[1], [0], [0], [1], [0, 0, 1, 1], [], []>} : vector<8x128xf32>, vector<128x128xf32>, vector<8x128xf32> -> vector<8x128xf32>
    %33 = arith.addf %31, %32 : vector<8x128xf32>
    %34 = math.tanh %33 : vector<8x128xf32>
    %35 = arith.index_cast %29 : i32 to index
    %c0_21 = arith.constant 0 : index
    %36 = vector.load %arg11[%35, %c0_21] : memref<64x128xf32, #tpu.memory_space<vmem>>, vector<8x128xf32>
    tpu.vector_store %arg11[%35, %c0_21], %34 {strides = array<i32>} : memref<64x128xf32, #tpu.memory_space<vmem>>, vector<8x128xf32>,
    %c3_i32 = arith.constant 3 : i32
    %c8_i32_22 = arith.constant 8 : i32
    %37 = arith.muli %c3_i32, %c8_i32_22 : i32
    %38 = tpu.assume_multiple %37, 8 : i32
    %39 = arith.index_cast %38 : i32 to index
    %c0_23 = arith.constant 0 : index
    %40 = vector.load %arg11[%39, %c0_23] : memref<64x128xf32, #tpu.memory_space<vmem>>, vector<8x128xf32>
    %cst_24 = arith.constant dense<0.000000e+00> : vector<8x128xf32>
    %41 = tpu.matmul %34, %8, %cst_24 {dimension_numbers = #tpu.dot_dimension_numbers<[1], [0], [0], [1], [0, 0, 1, 1], [], []>} : vector<8x128xf32>, vector<128x128xf32>, vector<8x128xf32> -> vector<8x128xf32>
    %42 = arith.addf %40, %41 : vector<8x128xf32>
    %43 = math.tanh %42 : vector<8x128xf32>
    %44 = arith.index_cast %38 : i32 to index
    %c0_25 = arith.constant 0 : index
    %45 = vector.load %arg11[%44, %c0_25] : memref<64x128xf32, #tpu.memory_space<vmem>>, vector<8x128xf32>
    tpu.vector_store %arg11[%44, %c0_25], %43 {strides = array<i32>} : memref<64x128xf32, #tpu.memory_space<vmem>>, vector<8x128xf32>,
    %c4_i32 = arith.constant 4 : i32
    %c8_i32_26 = arith.constant 8 : i32
    %46 = arith.muli %c4_i32, %c8_i32_26 : i32
    %47 = tpu.assume_multiple %46, 8 : i32
    %48 = arith.index_cast %47 : i32 to index
    %c0_27 = arith.constant 0 : index
    %49 = vector.load %arg11[%48, %c0_27] : memref<64x128xf32, #tpu.memory_space<vmem>>, vector<8x128xf32>
    %cst_28 = arith.constant dense<0.000000e+00> : vector<8x128xf32>
    %50 = tpu.matmul %43, %8, %cst_28 {dimension_numbers = #tpu.dot_dimension_numbers<[1], [0], [0], [1], [0, 0, 1, 1], [], []>} : vector<8x128xf32>, vector<128x128xf32>, vector<8x128xf32> -> vector<8x128xf32>
    %51 = arith.addf %49, %50 : vector<8x128xf32>
    %52 = math.tanh %51 : vector<8x128xf32>
    %53 = arith.index_cast %47 : i32 to index
    %c0_29 = arith.constant 0 : index
    %54 = vector.load %arg11[%53, %c0_29] : memref<64x128xf32, #tpu.memory_space<vmem>>, vector<8x128xf32>
    tpu.vector_store %arg11[%53, %c0_29], %52 {strides = array<i32>} : memref<64x128xf32, #tpu.memory_space<vmem>>, vector<8x128xf32>,
    %c5_i32 = arith.constant 5 : i32
    %c8_i32_30 = arith.constant 8 : i32
    %55 = arith.muli %c5_i32, %c8_i32_30 : i32
    %56 = tpu.assume_multiple %55, 8 : i32
    %57 = arith.index_cast %56 : i32 to index
    %c0_31 = arith.constant 0 : index
    %58 = vector.load %arg11[%57, %c0_31] : memref<64x128xf32, #tpu.memory_space<vmem>>, vector<8x128xf32>
    %cst_32 = arith.constant dense<0.000000e+00> : vector<8x128xf32>
    %59 = tpu.matmul %52, %8, %cst_32 {dimension_numbers = #tpu.dot_dimension_numbers<[1], [0], [0], [1], [0, 0, 1, 1], [], []>} : vector<8x128xf32>, vector<128x128xf32>, vector<8x128xf32> -> vector<8x128xf32>
    %60 = arith.addf %58, %59 : vector<8x128xf32>
    %61 = math.tanh %60 : vector<8x128xf32>
    %62 = arith.index_cast %56 : i32 to index
    %c0_33 = arith.constant 0 : index
    %63 = vector.load %arg11[%62, %c0_33] : memref<64x128xf32, #tpu.memory_space<vmem>>, vector<8x128xf32>
    tpu.vector_store %arg11[%62, %c0_33], %61 {strides = array<i32>} : memref<64x128xf32, #tpu.memory_space<vmem>>, vector<8x128xf32>,
    %c6_i32 = arith.constant 6 : i32
    %c8_i32_34 = arith.constant 8 : i32
    %64 = arith.muli %c6_i32, %c8_i32_34 : i32
    %65 = tpu.assume_multiple %64, 8 : i32
    %66 = arith.index_cast %65 : i32 to index
    %c0_35 = arith.constant 0 : index
    %67 = vector.load %arg11[%66, %c0_35] : memref<64x128xf32, #tpu.memory_space<vmem>>, vector<8x128xf32>
    %cst_36 = arith.constant dense<0.000000e+00> : vector<8x128xf32>
    %68 = tpu.matmul %61, %8, %cst_36 {dimension_numbers = #tpu.dot_dimension_numbers<[1], [0], [0], [1], [0, 0, 1, 1], [], []>} : vector<8x128xf32>, vector<128x128xf32>, vector<8x128xf32> -> vector<8x128xf32>
    %69 = arith.addf %67, %68 : vector<8x128xf32>
    %70 = math.tanh %69 : vector<8x128xf32>
    %71 = arith.index_cast %65 : i32 to index
    %c0_37 = arith.constant 0 : index
    %72 = vector.load %arg11[%71, %c0_37] : memref<64x128xf32, #tpu.memory_space<vmem>>, vector<8x128xf32>
    tpu.vector_store %arg11[%71, %c0_37], %70 {strides = array<i32>} : memref<64x128xf32, #tpu.memory_space<vmem>>, vector<8x128xf32>,
    %c7_i32 = arith.constant 7 : i32
    %c8_i32_38 = arith.constant 8 : i32
    %73 = arith.muli %c7_i32, %c8_i32_38 : i32
    %74 = tpu.assume_multiple %73, 8 : i32
    %75 = arith.index_cast %74 : i32 to index
    %c0_39 = arith.constant 0 : index
    %76 = vector.load %arg11[%75, %c0_39] : memref<64x128xf32, #tpu.memory_space<vmem>>, vector<8x128xf32>
    %cst_40 = arith.constant dense<0.000000e+00> : vector<8x128xf32>
    %77 = tpu.matmul %70, %8, %cst_40 {dimension_numbers = #tpu.dot_dimension_numbers<[1], [0], [0], [1], [0, 0, 1, 1], [], []>} : vector<8x128xf32>, vector<128x128xf32>, vector<8x128xf32> -> vector<8x128xf32>
    %78 = arith.addf %76, %77 : vector<8x128xf32>
    %79 = math.tanh %78 : vector<8x128xf32>
    %80 = arith.index_cast %74 : i32 to index
    %c0_41 = arith.constant 0 : index
    %81 = vector.load %arg11[%80, %c0_41] : memref<64x128xf32, #tpu.memory_space<vmem>>, vector<8x128xf32>
    tpu.vector_store %arg11[%80, %c0_41], %79 {strides = array<i32>} : memref<64x128xf32, #tpu.memory_space<vmem>>, vector<8x128xf32>,
    %c8_i32_42 = arith.constant 8 : i32
    %c0_43 = arith.constant 0 : index
    %c0_44 = arith.constant 0 : index
    %82 = vector.load %arg11[%c0_43, %c0_44] : memref<64x128xf32, #tpu.memory_space<vmem>>, vector<64x128xf32>
    %83 = arith.truncf %82 : vector<64x128xf32> to vector<64x128xbf16>
    %c0_45 = arith.constant 0 : index
    %c0_46 = arith.constant 0 : index
    %84 = vector.load %arg5[%c0_45, %c0_46] : memref<128x128xbf16, #tpu.memory_space<vmem>>, vector<128x128xbf16>
    %cst_47 = arith.constant dense<0.000000e+00> : vector<64x128xf32>
    %85 = tpu.matmul %83, %84, %cst_47 {dimension_numbers = #tpu.dot_dimension_numbers<[1], [0], [0], [1], [0, 0, 1, 1], [], []>} : vector<64x128xbf16>, vector<128x128xbf16>, vector<64x128xf32> -> vector<64x128xf32>
    %c0_48 = arith.constant 0 : index
    %c0_49 = arith.constant 0 : index
    %86 = vector.load %arg7[%c0_48, %c0_49] : memref<1x128xf32, #tpu.memory_space<vmem>>, vector<1x128xf32>
    %87 = vector.broadcast %86 : vector<1x128xf32> to vector<64x128xf32>
    %88 = arith.addf %85, %87 : vector<64x128xf32>
    %c0_50 = arith.constant 0 : index
    %c0_51 = arith.constant 0 : index
    %89 = vector.load %arg11[%c0_50, %c0_51] : memref<64x128xf32, #tpu.memory_space<vmem>>, vector<64x128xf32>
    tpu.vector_store %arg11[%c0_50, %c0_51], %88 {strides = array<i32>} : memref<64x128xf32, #tpu.memory_space<vmem>>, vector<64x128xf32>,
    %c0_52 = arith.constant 0 : index
    %c0_53 = arith.constant 0 : index
    %90 = vector.load %arg6[%c0_52, %c0_53] : memref<128x128xf32, #tpu.memory_space<vmem>>, vector<128x128xf32>
    %c0_i32_54 = arith.constant 0 : i32
    %c8_i32_55 = arith.constant 8 : i32
    %91 = arith.muli %c0_i32_54, %c8_i32_55 : i32
    %92 = tpu.assume_multiple %91, 8 : i32
    %93 = arith.index_cast %92 : i32 to index
    %c0_56 = arith.constant 0 : index
    %94 = vector.load %arg11[%93, %c0_56] : memref<64x128xf32, #tpu.memory_space<vmem>>, vector<8x128xf32>
    %cst_57 = arith.constant dense<0.000000e+00> : vector<8x128xf32>
    %95 = tpu.matmul %9, %90, %cst_57 {dimension_numbers = #tpu.dot_dimension_numbers<[1], [0], [0], [1], [0, 0, 1, 1], [], []>} : vector<8x128xf32>, vector<128x128xf32>, vector<8x128xf32> -> vector<8x128xf32>
    %96 = arith.addf %94, %95 : vector<8x128xf32>
    %97 = math.tanh %96 : vector<8x128xf32>
    %98 = arith.index_cast %92 : i32 to index
    %c0_58 = arith.constant 0 : index
    %99 = vector.load %arg11[%98, %c0_58] : memref<64x128xf32, #tpu.memory_space<vmem>>, vector<8x128xf32>
    tpu.vector_store %arg11[%98, %c0_58], %97 {strides = array<i32>} : memref<64x128xf32, #tpu.memory_space<vmem>>, vector<8x128xf32>,
    %c1_i32_59 = arith.constant 1 : i32
    %c8_i32_60 = arith.constant 8 : i32
    %100 = arith.muli %c1_i32_59, %c8_i32_60 : i32
    %101 = tpu.assume_multiple %100, 8 : i32
    %102 = arith.index_cast %101 : i32 to index
    %c0_61 = arith.constant 0 : index
    %103 = vector.load %arg11[%102, %c0_61] : memref<64x128xf32, #tpu.memory_space<vmem>>, vector<8x128xf32>
    %cst_62 = arith.constant dense<0.000000e+00> : vector<8x128xf32>
    %104 = tpu.matmul %97, %90, %cst_62 {dimension_numbers = #tpu.dot_dimension_numbers<[1], [0], [0], [1], [0, 0, 1, 1], [], []>} : vector<8x128xf32>, vector<128x128xf32>, vector<8x128xf32> -> vector<8x128xf32>
    %105 = arith.addf %103, %104 : vector<8x128xf32>
    %106 = math.tanh %105 : vector<8x128xf32>
    %107 = arith.index_cast %101 : i32 to index
    %c0_63 = arith.constant 0 : index
    %108 = vector.load %arg11[%107, %c0_63] : memref<64x128xf32, #tpu.memory_space<vmem>>, vector<8x128xf32>
    tpu.vector_store %arg11[%107, %c0_63], %106 {strides = array<i32>} : memref<64x128xf32, #tpu.memory_space<vmem>>, vector<8x128xf32>,
    %c2_i32_64 = arith.constant 2 : i32
    %c8_i32_65 = arith.constant 8 : i32
    %109 = arith.muli %c2_i32_64, %c8_i32_65 : i32
    %110 = tpu.assume_multiple %109, 8 : i32
    %111 = arith.index_cast %110 : i32 to index
    %c0_66 = arith.constant 0 : index
    %112 = vector.load %arg11[%111, %c0_66] : memref<64x128xf32, #tpu.memory_space<vmem>>, vector<8x128xf32>
    %cst_67 = arith.constant dense<0.000000e+00> : vector<8x128xf32>
    %113 = tpu.matmul %106, %90, %cst_67 {dimension_numbers = #tpu.dot_dimension_numbers<[1], [0], [0], [1], [0, 0, 1, 1], [], []>} : vector<8x128xf32>, vector<128x128xf32>, vector<8x128xf32> -> vector<8x128xf32>
    %114 = arith.addf %112, %113 : vector<8x128xf32>
    %115 = math.tanh %114 : vector<8x128xf32>
    %116 = arith.index_cast %110 : i32 to index
    %c0_68 = arith.constant 0 : index
    %117 = vector.load %arg11[%116, %c0_68] : memref<64x128xf32, #tpu.memory_space<vmem>>, vector<8x128xf32>
    tpu.vector_store %arg11[%116, %c0_68], %115 {strides = array<i32>} : memref<64x128xf32, #tpu.memory_space<vmem>>, vector<8x128xf32>,
    %c3_i32_69 = arith.constant 3 : i32
    %c8_i32_70 = arith.constant 8 : i32
    %118 = arith.muli %c3_i32_69, %c8_i32_70 : i32
    %119 = tpu.assume_multiple %118, 8 : i32
    %120 = arith.index_cast %119 : i32 to index
    %c0_71 = arith.constant 0 : index
    %121 = vector.load %arg11[%120, %c0_71] : memref<64x128xf32, #tpu.memory_space<vmem>>, vector<8x128xf32>
    %cst_72 = arith.constant dense<0.000000e+00> : vector<8x128xf32>
    %122 = tpu.matmul %115, %90, %cst_72 {dimension_numbers = #tpu.dot_dimension_numbers<[1], [0], [0], [1], [0, 0, 1, 1], [], []>} : vector<8x128xf32>, vector<128x128xf32>, vector<8x128xf32> -> vector<8x128xf32>
    %123 = arith.addf %121, %122 : vector<8x128xf32>
    %124 = math.tanh %123 : vector<8x128xf32>
    %125 = arith.index_cast %119 : i32 to index
    %c0_73 = arith.constant 0 : index
    %126 = vector.load %arg11[%125, %c0_73] : memref<64x128xf32, #tpu.memory_space<vmem>>, vector<8x128xf32>
    tpu.vector_store %arg11[%125, %c0_73], %124 {strides = array<i32>} : memref<64x128xf32, #tpu.memory_space<vmem>>, vector<8x128xf32>,
    %c4_i32_74 = arith.constant 4 : i32
    %c8_i32_75 = arith.constant 8 : i32
    %127 = arith.muli %c4_i32_74, %c8_i32_75 : i32
    %128 = tpu.assume_multiple %127, 8 : i32
    %129 = arith.index_cast %128 : i32 to index
    %c0_76 = arith.constant 0 : index
    %130 = vector.load %arg11[%129, %c0_76] : memref<64x128xf32, #tpu.memory_space<vmem>>, vector<8x128xf32>
    %cst_77 = arith.constant dense<0.000000e+00> : vector<8x128xf32>
    %131 = tpu.matmul %124, %90, %cst_77 {dimension_numbers = #tpu.dot_dimension_numbers<[1], [0], [0], [1], [0, 0, 1, 1], [], []>} : vector<8x128xf32>, vector<128x128xf32>, vector<8x128xf32> -> vector<8x128xf32>
    %132 = arith.addf %130, %131 : vector<8x128xf32>
    %133 = math.tanh %132 : vector<8x128xf32>
    %134 = arith.index_cast %128 : i32 to index
    %c0_78 = arith.constant 0 : index
    %135 = vector.load %arg11[%134, %c0_78] : memref<64x128xf32, #tpu.memory_space<vmem>>, vector<8x128xf32>
    tpu.vector_store %arg11[%134, %c0_78], %133 {strides = array<i32>} : memref<64x128xf32, #tpu.memory_space<vmem>>, vector<8x128xf32>,
    %c5_i32_79 = arith.constant 5 : i32
    %c8_i32_80 = arith.constant 8 : i32
    %136 = arith.muli %c5_i32_79, %c8_i32_80 : i32
    %137 = tpu.assume_multiple %136, 8 : i32
    %138 = arith.index_cast %137 : i32 to index
    %c0_81 = arith.constant 0 : index
    %139 = vector.load %arg11[%138, %c0_81] : memref<64x128xf32, #tpu.memory_space<vmem>>, vector<8x128xf32>
    %cst_82 = arith.constant dense<0.000000e+00> : vector<8x128xf32>
    %140 = tpu.matmul %133, %90, %cst_82 {dimension_numbers = #tpu.dot_dimension_numbers<[1], [0], [0], [1], [0, 0, 1, 1], [], []>} : vector<8x128xf32>, vector<128x128xf32>, vector<8x128xf32> -> vector<8x128xf32>
    %141 = arith.addf %139, %140 : vector<8x128xf32>
    %142 = math.tanh %141 : vector<8x128xf32>
    %143 = arith.index_cast %137 : i32 to index
    %c0_83 = arith.constant 0 : index
    %144 = vector.load %arg11[%143, %c0_83] : memref<64x128xf32, #tpu.memory_space<vmem>>, vector<8x128xf32>
    tpu.vector_store %arg11[%143, %c0_83], %142 {strides = array<i32>} : memref<64x128xf32, #tpu.memory_space<vmem>>, vector<8x128xf32>,
    %c6_i32_84 = arith.constant 6 : i32
    %c8_i32_85 = arith.constant 8 : i32
    %145 = arith.muli %c6_i32_84, %c8_i32_85 : i32
    %146 = tpu.assume_multiple %145, 8 : i32
    %147 = arith.index_cast %146 : i32 to index
    %c0_86 = arith.constant 0 : index
    %148 = vector.load %arg11[%147, %c0_86] : memref<64x128xf32, #tpu.memory_space<vmem>>, vector<8x128xf32>
    %cst_87 = arith.constant dense<0.000000e+00> : vector<8x128xf32>
    %149 = tpu.matmul %142, %90, %cst_87 {dimension_numbers = #tpu.dot_dimension_numbers<[1], [0], [0], [1], [0, 0, 1, 1], [], []>} : vector<8x128xf32>, vector<128x128xf32>, vector<8x128xf32> -> vector<8x128xf32>
    %150 = arith.addf %148, %149 : vector<8x128xf32>
    %151 = math.tanh %150 : vector<8x128xf32>
    %152 = arith.index_cast %146 : i32 to index
    %c0_88 = arith.constant 0 : index
    %153 = vector.load %arg11[%152, %c0_88] : memref<64x128xf32, #tpu.memory_space<vmem>>, vector<8x128xf32>
    tpu.vector_store %arg11[%152, %c0_88], %151 {strides = array<i32>} : memref<64x128xf32, #tpu.memory_space<vmem>>, vector<8x128xf32>,
    %c7_i32_89 = arith.constant 7 : i32
    %c8_i32_90 = arith.constant 8 : i32
    %154 = arith.muli %c7_i32_89, %c8_i32_90 : i32
    %155 = tpu.assume_multiple %154, 8 : i32
    %156 = arith.index_cast %155 : i32 to index
    %c0_91 = arith.constant 0 : index
    %157 = vector.load %arg11[%156, %c0_91] : memref<64x128xf32, #tpu.memory_space<vmem>>, vector<8x128xf32>
    %cst_92 = arith.constant dense<0.000000e+00> : vector<8x128xf32>
    %158 = tpu.matmul %151, %90, %cst_92 {dimension_numbers = #tpu.dot_dimension_numbers<[1], [0], [0], [1], [0, 0, 1, 1], [], []>} : vector<8x128xf32>, vector<128x128xf32>, vector<8x128xf32> -> vector<8x128xf32>
    %159 = arith.addf %157, %158 : vector<8x128xf32>
    %160 = math.tanh %159 : vector<8x128xf32>
    %161 = arith.index_cast %155 : i32 to index
    %c0_93 = arith.constant 0 : index
    %162 = vector.load %arg11[%161, %c0_93] : memref<64x128xf32, #tpu.memory_space<vmem>>, vector<8x128xf32>
    tpu.vector_store %arg11[%161, %c0_93], %160 {strides = array<i32>} : memref<64x128xf32, #tpu.memory_space<vmem>>, vector<8x128xf32>,
    %c8_i32_94 = arith.constant 8 : i32
    %c0_95 = arith.constant 0 : index
    %c0_96 = arith.constant 0 : index
    %163 = vector.load %arg11[%c0_95, %c0_96] : memref<64x128xf32, #tpu.memory_space<vmem>>, vector<64x128xf32>
    %164 = arith.truncf %163 : vector<64x128xf32> to vector<64x128xbf16>
    %c0_97 = arith.constant 0 : index
    %c0_98 = arith.constant 0 : index
    %165 = vector.load %arg8[%c0_97, %c0_98] : memref<128x128xbf16, #tpu.memory_space<vmem>>, vector<128x128xbf16>
    %cst_99 = arith.constant dense<0.000000e+00> : vector<64x128xf32>
    %166 = tpu.matmul %164, %165, %cst_99 {dimension_numbers = #tpu.dot_dimension_numbers<[1], [0], [0], [1], [0, 0, 1, 1], [], []>} : vector<64x128xbf16>, vector<128x128xbf16>, vector<64x128xf32> -> vector<64x128xf32>
    %c0_100 = arith.constant 0 : index
    %c0_101 = arith.constant 0 : index
    %167 = vector.load %arg9[%c0_100, %c0_101] : memref<1x128xf32, #tpu.memory_space<vmem>>, vector<1x128xf32>
    %168 = vector.broadcast %167 : vector<1x128xf32> to vector<64x128xf32>
    %169 = arith.addf %166, %168 : vector<64x128xf32>
    %c0_102 = arith.constant 0 : index
    %c0_103 = arith.constant 0 : index
    %c0_104 = arith.constant 0 : index
    %170 = vector.load %arg10[%c0_102, %c0_103, %c0_104] : memref<1x64x128xf32, #tpu.memory_space<vmem>>, vector<1x64x128xf32>
    %171 = vector.shape_cast %170 : vector<1x64x128xf32> to vector<64x128xf32>
    %172 = vector.shape_cast %169 : vector<64x128xf32> to vector<1x64x128xf32>
    tpu.vector_store %arg10[%c0_102, %c0_103, %c0_104], %172 {strides = array<i32>} : memref<1x64x128xf32, #tpu.memory_space<vmem>>, vector<1x64x128xf32>,
    return
  }
  func.func @transform_0(%arg0: i32) -> (i32, i32, i32) {
    %c0_i32 = arith.constant 0 : i32
    %c0_i32_0 = arith.constant 0 : i32
    %c0_i32_1 = arith.constant 0 : i32
    return %arg0, %c0_i32, %c0_i32_0 : i32, i32, i32
  }
  func.func @transform_1(%arg0: i32) -> (i32, i32) {
    %c0_i32 = arith.constant 0 : i32
    %c0_i32_0 = arith.constant 0 : i32
    %c0_i32_1 = arith.constant 0 : i32
    return %c0_i32, %c0_i32_0 : i32, i32
  }
  func.func @transform_2(%arg0: i32) -> (i32, i32) {
    %c0_i32 = arith.constant 0 : i32
    %c0_i32_0 = arith.constant 0 : i32
    %c0_i32_1 = arith.constant 0 : i32
    return %c0_i32, %c0_i32_0 : i32, i32
  }
  func.func @transform_3(%arg0: i32) -> (i32, i32) {
    %c0_i32 = arith.constant 0 : i32
    %c0_i32_0 = arith.constant 0 : i32
    %c0_i32_1 = arith.constant 0 : i32
    return %c0_i32, %c0_i32_0 : i32, i32
  }
  func.func @transform_4(%arg0: i32) -> (i32, i32) {
    %c0_i32 = arith.constant 0 : i32
    %c0_i32_0 = arith.constant 0 : i32
    %c0_i32_1 = arith.constant 0 : i32
    return %c0_i32, %c0_i32_0 : i32, i32
  }
  func.func @transform_5(%arg0: i32) -> (i32, i32) {
    %c0_i32 = arith.constant 0 : i32
    %c0_i32_0 = arith.constant 0 : i32
    %c0_i32_1 = arith.constant 0 : i32
    return %c0_i32, %c0_i32_0 : i32, i32
  }
  func.func @transform_6(%arg0: i32) -> (i32, i32) {
    %c0_i32 = arith.constant 0 : i32
    %c0_i32_0 = arith.constant 0 : i32
    %c0_i32_1 = arith.constant 0 : i32
    return %c0_i32, %c0_i32_0 : i32, i32
  }
  func.func @transform_7(%arg0: i32) -> (i32, i32) {
    %c0_i32 = arith.constant 0 : i32
    %c0_i32_0 = arith.constant 0 : i32
    %c0_i32_1 = arith.constant 0 : i32
    return %c0_i32, %c0_i32_0 : i32, i32
  }
  func.func @transform_8(%arg0: i32) -> (i32, i32) {
    %c0_i32 = arith.constant 0 : i32
    %c0_i32_0 = arith.constant 0 : i32
    %c0_i32_1 = arith.constant 0 : i32
    return %c0_i32, %c0_i32_0 : i32, i32
  }
  func.func @transform_9(%arg0: i32) -> (i32, i32, i32) {
    %c0_i32 = arith.constant 0 : i32
    %c0_i32_0 = arith.constant 0 : i32
    %c0_i32_1 = arith.constant 0 : i32
    return %arg0, %c0_i32, %c0_i32_0 : i32, i32, i32
  }
}

</mosaic_0001>

<llo_original>
// kernel: tpu_custom_call.1
$region0: #{tpu_custom_call.1}
  #allocation0 [shape = 'u32[]', space=smem, size = 0x4, offset = 0x4, fixed_abs, tag = 'smem constant byte address 0x4 - core index']
  #allocation1 [shape = 'u32[144,128]{1,0:T(1,128)}', space=vmem, size = 0x12000, scoped, tag = 'internal scratch']
  #allocation2 [shape = 'f32[64,128]{1,0:T(8,128)}', space=vmem, size = 0x8000, scoped, tag = 'scratch operand']
  %s0 = inlined_call_operand.vmem [shape: bf16[1,64,16], index: 0, kind: input, shape index: {}]
  %s1 = inlined_call_operand.hbm [shape: bf16[16,128], index: 1, kind: input, shape index: {}]
  %s2 = inlined_call_operand.hbm [shape: f32[128,128], index: 2, kind: input, shape index: {}]
  %s3 = inlined_call_operand.vmem [shape: f32[1,128], index: 3, kind: input, shape index: {}]
  %s4 = inlined_call_operand.hbm [shape: bf16[128,128], index: 4, kind: input, shape index: {}]
  %s5 = inlined_call_operand.hbm [shape: f32[128,128], index: 5, kind: input, shape index: {}]
  %s6 = inlined_call_operand.vmem [shape: f32[1,128], index: 6, kind: input, shape index: {}]
  %s7 = inlined_call_operand.vmem [shape: bf16[128,128], index: 7, kind: input, shape index: {}]
  %s8 = inlined_call_operand.vmem [shape: f32[1,128], index: 8, kind: input, shape index: {}]
  %s9 = inlined_call_operand.hbm [shape: f32[1,64,128], index: 9, kind: output, shape index: {}]
  %s10 = sld [smem:[#allocation0]]
  $region62: #{tpu_custom_call.1} parent=0
    _
  %s12 = ssub.s32 1, %s10
  %s13 = scalar_select 0, %s12, %s10
  $region1: #{tpu_custom_call.1} parent=0
    #allocation3 [shape = 'u8[4096]{0}', space=vmem, size = 0x1000, scoped, tag = 'input window, operand 1, single buffered']
    #allocation4 [shape = 's32[1]{0}', space=sflag, size = 0x4, scoped, tag = 'scoped memory for tpu_custom_call.1']
    #allocation5 [shape = 's32[1]{0}', space=sflag, size = 0x4, scoped, tag = 'scoped memory for tpu_custom_call.1']
    #allocation6 [shape = 'u8[65536]{0}', space=vmem, size = 0x10000, scoped, tag = 'input window, operand 2, single buffered']
    #allocation7 [shape = 's32[1]{0}', space=sflag, size = 0x4, scoped, tag = 'scoped memory for tpu_custom_call.1']
    #allocation8 [shape = 'u8[32768]{0}', space=vmem, size = 0x8000, scoped, tag = 'input window, operand 4, single buffered']
    #allocation9 [shape = 'u8[65536]{0}', space=vmem, size = 0x10000, scoped, tag = 'input window, operand 5, single buffered']
    #allocation10 [shape = 's32[1]{0}', space=sflag, size = 0x4, scoped, tag = 'scoped memory for tpu_custom_call.1']
    #allocation11 [shape = 'u8[32768]{0}', space=vmem, size = 0x8000, scoped, tag = 'output window, operand 0, single buffered']
    %14 = vsyncpa [#allocation4], 0
    %15 = vsyncpa [#allocation7], 0
    %16 = vsyncpa [#allocation10], 0
    %17 = vsyncpa [#allocation5], 0
    // Predicated region
    $region2: #{tpu_custom_call.1} parent=1 // pred_check
      _
    $region3: #{tpu_custom_call.1} parent=1 // pred_check_branch
      %19 = sbr.rel (0) target = $region5
    $region4: #{tpu_custom_call.1} parent=1 // pred_region
      _
    $region5: #{tpu_custom_call.1} parent=1 // pred_fallthru
      _
    // Predicated region
    $region6: #{tpu_custom_call.1} parent=1 // pred_check
      _
    $region7: #{tpu_custom_call.1} parent=1 // pred_check_branch
      %21 = sbr.rel (0) target = $region9
    $region8: #{tpu_custom_call.1} parent=1 // pred_region
      %s23 = ssub.s32 128, 128
      %24 = vsyncadd [#allocation4], %s23
      %s25 = sshll.u32 [#allocation3], 4
      %s26 = int_to_ptr.vmem [resolvable:$true] %s25
      %31 = dma.hbm_to_vmem [thread:$0]  %s1, 128, %s26, [#allocation4], 64, 64, 4
    $region9: #{tpu_custom_call.1} parent=1 // pred_fallthru
      _
    // Predicated region
    $region10: #{tpu_custom_call.1} parent=1 // pred_check
      _
    $region11: #{tpu_custom_call.1} parent=1 // pred_check_branch
      %33 = sbr.rel (0) target = $region13
    $region12: #{tpu_custom_call.1} parent=1 // pred_region
      %s35 = ssub.s32 2048, 2048
      %36 = vsyncadd [#allocation7], %s35
      %s37 = sshll.u32 [#allocation6], 4
      %s38 = int_to_ptr.vmem [resolvable:$true] %s37
      %43 = dma.hbm_to_vmem [thread:$0]  %s2, 2048, %s38, [#allocation7], 128, 128, 8
    $region13: #{tpu_custom_call.1} parent=1 // pred_fallthru
      _
    // Predicated region
    $region14: #{tpu_custom_call.1} parent=1 // pred_check
      _
    $region15: #{tpu_custom_call.1} parent=1 // pred_check_branch
      %45 = sbr.rel (0) target = $region17
    $region16: #{tpu_custom_call.1} parent=1 // pred_region
      _
    $region17: #{tpu_custom_call.1} parent=1 // pred_fallthru
      _
    // Predicated region
    $region18: #{tpu_custom_call.1} parent=1 // pred_check
      _
    $region19: #{tpu_custom_call.1} parent=1 // pred_check_branch
      %47 = sbr.rel (0) target = $region21
    $region20: #{tpu_custom_call.1} parent=1 // pred_region
      %s49 = ssub.s32 1024, 1024
      %50 = vsyncadd [#allocation7], %s49
      %s51 = sshll.u32 [#allocation8], 4
      %s52 = int_to_ptr.vmem [resolvable:$true] %s51
      %57 = dma.hbm_to_vmem [thread:$0]  %s4, 1024, %s52, [#allocation7], 64, 64, 4
    $region21: #{tpu_custom_call.1} parent=1 // pred_fallthru
      _
    // Predicated region
    $region22: #{tpu_custom_call.1} parent=1 // pred_check
      _
    $region23: #{tpu_custom_call.1} parent=1 // pred_check_branch
      %59 = sbr.rel (0) target = $region25
    $region24: #{tpu_custom_call.1} parent=1 // pred_region
      %s61 = ssub.s32 2048, 2048
      %62 = vsyncadd [#allocation10], %s61
      %s63 = sshll.u32 [#allocation9], 4
      %s64 = int_to_ptr.vmem [resolvable:$true] %s63
      %69 = dma.hbm_to_vmem [thread:$0]  %s5, 2048, %s64, [#allocation10], 128, 128, 8
    $region25: #{tpu_custom_call.1} parent=1 // pred_fallthru
      _
    // Predicated region
    $region26: #{tpu_custom_call.1} parent=1 // pred_check
      _
    $region27: #{tpu_custom_call.1} parent=1 // pred_check_branch
      %71 = sbr.rel (0) target = $region29
    $region28: #{tpu_custom_call.1} parent=1 // pred_region
      _
    $region29: #{tpu_custom_call.1} parent=1 // pred_fallthru
      _
    // Predicated region
    $region30: #{tpu_custom_call.1} parent=1 // pred_check
      _
    $region31: #{tpu_custom_call.1} parent=1 // pred_check_branch
      %73 = sbr.rel (0) target = $region33
    $region32: #{tpu_custom_call.1} parent=1 // pred_region
      _
    $region33: #{tpu_custom_call.1} parent=1 // pred_fallthru
      _
    // Predicated region
    $region34: #{tpu_custom_call.1} parent=1 // pred_check
      _
    $region35: #{tpu_custom_call.1} parent=1 // pred_check_branch
      %75 = sbr.rel (0) target = $region37
    $region36: #{tpu_custom_call.1} parent=1 // pred_region
      _
    $region37: #{tpu_custom_call.1} parent=1 // pred_fallthru
      _
    // Predicated region
    $region38: #{tpu_custom_call.1} parent=1 // pred_check
      _
    $region39: #{tpu_custom_call.1} parent=1 // pred_check_branch
      %77 = sbr.rel (0) target = $region41
    $region40: #{tpu_custom_call.1} parent=1 // pred_region
      %78 = dma.done [#allocation4], 128
    $region41: #{tpu_custom_call.1} parent=1 // pred_fallthru
      _
    // Predicated region
    $region42: #{tpu_custom_call.1} parent=1 // pred_check
      _
    $region43: #{tpu_custom_call.1} parent=1 // pred_check_branch
      %80 = sbr.rel (0) target = $region45
    $region44: #{tpu_custom_call.1} parent=1 // pred_region
      %81 = dma.done [#allocation7], 2048
    $region45: #{tpu_custom_call.1} parent=1 // pred_fallthru
      _
    // Predicated region
    $region46: #{tpu_custom_call.1} parent=1 // pred_check
      _
    $region47: #{tpu_custom_call.1} parent=1 // pred_check_branch
      %83 = sbr.rel (0) target = $region49
    $region48: #{tpu_custom_call.1} parent=1 // pred_region
      %84 = dma.done [#allocation7], 1024
    $region49: #{tpu_custom_call.1} parent=1 // pred_fallthru
      _
    // Predicated region
    $region50: #{tpu_custom_call.1} parent=1 // pred_check
      _
    $region51: #{tpu_custom_call.1} parent=1 // pred_check_branch
      %86 = sbr.rel (0) target = $region53
    $region52: #{tpu_custom_call.1} parent=1 // pred_region
      %87 = dma.done [#allocation10], 2048
    $region53: #{tpu_custom_call.1} parent=1 // pred_fallthru
      _
    %v89 = vld [vmem:[%s0] sm:$0xf]
    %v90 = vld [vmem:[%s0 + $0x4] sm:$0xf]
    %v91 = vld [vmem:[%s0 + $0x8] sm:$0xf]
    %v92 = vld [vmem:[%s0 + $0xc] sm:$0xf]
    %v93 = vld [vmem:[%s0 + $0x10] sm:$0xf]
    %v94 = vld [vmem:[%s0 + $0x14] sm:$0xf]
    %v95 = vld [vmem:[%s0 + $0x18] sm:$0xf]
    %v96 = vld [vmem:[%s0 + $0x1c] sm:$0xf]
    %v97 = vld [vmem:[#allocation3] sm:$0xf]
    %v98 = vld [vmem:[#allocation3 + $0x4] sm:$0xf]
    %v99 = vld [vmem:[%s3] sm:$0x1]
    %v101 = vlaneseq
    %v102 = vshrl.u32 %v101, 7
    %v103 = vsub.s32 0, %v102
    %v104 = vrot.slane %v99, %v103
    %v114 = vunpack.c.l.b16 %v89
    %v115 = vunpack.c.l.b16 %v90
    %v116 = vunpack.c.l.b16 %v91
    %v117 = vunpack.c.l.b16 %v92
    %v118 = vunpack.c.l.b16 %v93
    %v119 = vunpack.c.l.b16 %v94
    %v120 = vunpack.c.l.b16 %v95
    %v121 = vunpack.c.l.b16 %v96
    %v122 = vpack.c.b16 %v115, %v114
    %v123 = vpack.c.b16 %v117, %v116
    %v124 = vpack.c.b16 %v119, %v118
    %v125 = vpack.c.b16 %v121, %v120
    %v128 = vunpack.c.l.b16 %v97
    %v129 = vunpack.c.l.b16 %v98
    %v130 = vpack.c.b16 %v129, %v128
    %vm132 = vcmask 130048
    %v134 = vsel %vm132, %v122, 0
    %v137 = vsel %vm132, %v123, 0
    %v140 = vsel %vm132, %v124, 0
    %v143 = vsel %vm132, %v125, 0
    %145 = vmatprep.subr.bf16.mxu0 0
    %146 = vmatpush1.bf16.msra.mxu0 %v130
    %147 = vmatprep.subr.bf16.mxu0 0
    %148 = vmatpush1.bf16.msra.mxu0 0
    %149 = vmatprep.subr.bf16.mxu0 0
    %150 = vmatpush1.bf16.msra.mxu0 0
    %151 = vmatprep.subr.bf16.mxu0 0
    %152 = vmatpush1.bf16.msra.mxu0 0
    %153 = vmatprep.subr.bf16.mxu0 0
    %154 = vmatpush1.bf16.msra.mxu0 0
    %155 = vmatprep.subr.bf16.mxu0 0
    %156 = vmatpush1.bf16.msra.mxu0 0
    %157 = vmatprep.subr.bf16.mxu0 0
    %158 = vmatpush1.bf16.msra.mxu0 0
    %159 = vmatprep.subr.bf16.mxu0 0
    %160 = vmatpush1.bf16.msra.mxu0 0
    %161 = vmatprep.subr.bf16.mxu0 0
    %162 = vmatpush1.bf16.msra.mxu0 0
    %163 = vmatprep.subr.bf16.mxu0 0
    %164 = vmatpush1.bf16.msra.mxu0 0
    %165 = vmatprep.subr.bf16.mxu0 0
    %166 = vmatpush1.bf16.msra.mxu0 0
    %167 = vmatprep.subr.bf16.mxu0 0
    %168 = vmatpush1.bf16.msra.mxu0 0
    %169 = vmatprep.subr.bf16.mxu0 0
    %170 = vmatpush1.bf16.msra.mxu0 0
    %171 = vmatprep.subr.bf16.mxu0 0
    %172 = vmatpush1.bf16.msra.mxu0 0
    %173 = vmatprep.subr.bf16.mxu0 0
    %174 = vmatpush1.bf16.msra.mxu0 0
    %175 = vmatprep.subr.bf16.mxu0 0
    %176 = vmatpush1.bf16.msra.mxu0 0
    %177 = vmatprep.mubr.bf16.mxu0 0
    %178 = vmatmul.mubr.bf16.gmra.mrb[0].mxu0 %v134
    %v179 = vpop.f32.mrb[0].mxu0
    %v180 = vadd.f32 %v104, %v179
    %v181 = vpop.f32.mrb[0].mxu0
    %v182 = vpop.f32.mrb[0].mxu0
    %v183 = vadd.f32 %v104, %v182
    %v184 = vpop.f32.mrb[0].mxu0
    %185 = vmatprep.mubr.bf16.mxu0 0
    %186 = vmatmul.mubr.bf16.gmra.mrb[0].mxu0 %v137
    %v187 = vpop.f32.mrb[0].mxu0
    %v188 = vadd.f32 %v104, %v187
    %v189 = vpop.f32.mrb[0].mxu0
    %v190 = vpop.f32.mrb[0].mxu0
    %v191 = vadd.f32 %v104, %v190
    %v192 = vpop.f32.mrb[0].mxu0
    %193 = vmatprep.mubr.bf16.mxu0 0
    %194 = vmatmul.mubr.bf16.gmra.mrb[0].mxu0 %v140
    %v195 = vpop.f32.mrb[0].mxu0
    %v196 = vadd.f32 %v104, %v195
    %v197 = vpop.f32.mrb[0].mxu0
    %v198 = vpop.f32.mrb[0].mxu0
    %v199 = vadd.f32 %v104, %v198
    %v200 = vpop.f32.mrb[0].mxu0
    %201 = vmatprep.mubr.bf16.mxu0 0
    %202 = vmatmul.mubr.bf16.gmra.mrb[0].mxu0 %v143
    %v203 = vpop.f32.mrb[0].mxu0
    %v204 = vadd.f32 %v104, %v203
    %v205 = vpop.f32.mrb[0].mxu0
    %v206 = vpop.f32.mrb[0].mxu0
    %v207 = vadd.f32 %v104, %v206
    %v208 = vpop.f32.mrb[0].mxu0
    %209 = vdwg.mxu0
    %210 = vst [vmem:[#allocation2] sm:$0xff] %v180
    %211 = vst [vmem:[#allocation2 + $0x8] sm:$0xff] %v183
    %212 = vst [vmem:[#allocation2 + $0x10] sm:$0xff] %v188
    %213 = vst [vmem:[#allocation2 + $0x18] sm:$0xff] %v191
    %214 = vst [vmem:[#allocation2 + $0x20] sm:$0xff] %v196
    %215 = vst [vmem:[#allocation2 + $0x28] sm:$0xff] %v199
    %216 = vst [vmem:[#allocation2 + $0x30] sm:$0xff] %v204
    %217 = vst [vmem:[#allocation2 + $0x38] sm:$0xff] %v207
    %v218 = vld [vmem:[#allocation6] sm:$0xff]
    %v219 = vld [vmem:[#allocation6 + $0x8] sm:$0xff]
    %v220 = vld [vmem:[#allocation6 + $0x10] sm:$0xff]
    %v221 = vld [vmem:[#allocation6 + $0x18] sm:$0xff]
    %v222 = vld [vmem:[#allocation6 + $0x20] sm:$0xff]
    %v223 = vld [vmem:[#allocation6 + $0x28] sm:$0xff]
    %v224 = vld [vmem:[#allocation6 + $0x30] sm:$0xff]
    %v225 = vld [vmem:[#allocation6 + $0x38] sm:$0xff]
    %v226 = vld [vmem:[#allocation6 + $0x40] sm:$0xff]
    %v227 = vld [vmem:[#allocation6 + $0x48] sm:$0xff]
    %v228 = vld [vmem:[#allocation6 + $0x50] sm:$0xff]
    %v229 = vld [vmem:[#allocation6 + $0x58] sm:$0xff]
    %v230 = vld [vmem:[#allocation6 + $0x60] sm:$0xff]
    %v231 = vld [vmem:[#allocation6 + $0x68] sm:$0xff]
    %v232 = vld [vmem:[#allocation6 + $0x70] sm:$0xff]
    %v233 = vld [vmem:[#allocation6 + $0x78] sm:$0xff]
    %v234 = vld [vmem:[#allocation2] sm:$0xff]
    %235 = vmatprep.subr.mxu0 0.0
    %236 = vmatpush1.msra.mxu0 %v218
    %237 = vmatprep.subr.mxu0 0.0
    %238 = vmatpush1.msra.mxu0 %v219
    %239 = vmatprep.subr.mxu0 0.0
    %240 = vmatpush1.msra.mxu0 %v220
    %241 = vmatprep.subr.mxu0 0.0
    %242 = vmatpush1.msra.mxu0 %v221
    %243 = vmatprep.subr.mxu0 0.0
    %244 = vmatpush1.msra.mxu0 %v222
    %245 = vmatprep.subr.mxu0 0.0
    %246 = vmatpush1.msra.mxu0 %v223
    %247 = vmatprep.subr.mxu0 0.0
    %248 = vmatpush1.msra.mxu0 %v224
    %249 = vmatprep.subr.mxu0 0.0
    %250 = vmatpush1.msra.mxu0 %v225
    %251 = vmatprep.subr.mxu0 0.0
    %252 = vmatpush1.msra.mxu0 %v226
    %253 = vmatprep.subr.mxu0 0.0
    %254 = vmatpush1.msra.mxu0 %v227
    %255 = vmatprep.subr.mxu0 0.0
    %256 = vmatpush1.msra.mxu0 %v228
    %257 = vmatprep.subr.mxu0 0.0
    %258 = vmatpush1.msra.mxu0 %v229
    %259 = vmatprep.subr.mxu0 0.0
    %260 = vmatpush1.msra.mxu0 %v230
    %261 = vmatprep.subr.mxu0 0.0
    %262 = vmatpush1.msra.mxu0 %v231
    %263 = vmatprep.subr.mxu0 0.0
    %264 = vmatpush1.msra.mxu0 %v232
    %265 = vmatprep.subr.mxu0 0.0
    %266 = vmatpush1.msra.mxu0 %v233
    %267 = vmatprep.subr.mxu0 0.0
    %268 = vmatpush1.msra.mxu0 0.0
    %269 = vmatprep.subr.mxu0 0.0
    %270 = vmatpush1.msra.mxu0 0.0
    %271 = vmatprep.subr.mxu0 0.0
    %272 = vmatpush1.msra.mxu0 0.0
    %273 = vmatprep.subr.mxu0 0.0
    %274 = vmatpush1.msra.mxu0 0.0
    %275 = vmatprep.subr.mxu0 0.0
    %276 = vmatpush1.msra.mxu0 0.0
    %277 = vmatprep.subr.mxu0 0.0
    %278 = vmatpush1.msra.mxu0 0.0
    %279 = vmatprep.subr.mxu0 0.0
    %280 = vmatpush1.msra.mxu0 0.0
    %281 = vmatprep.subr.mxu0 0.0
    %282 = vmatpush1.msra.mxu0 0.0
    %283 = vmatprep.subr.mxu0 0.0
    %284 = vmatpush1.msra.mxu0 0.0
    %285 = vmatprep.subr.mxu0 0.0
    %286 = vmatpush1.msra.mxu0 0.0
    %287 = vmatprep.subr.mxu0 0.0
    %288 = vmatpush1.msra.mxu0 0.0
    %289 = vmatprep.subr.mxu0 0.0
    %290 = vmatpush1.msra.mxu0 0.0
    %291 = vmatprep.subr.mxu0 0.0
    %292 = vmatpush1.msra.mxu0 0.0
    %293 = vmatprep.subr.mxu0 0.0
    %294 = vmatpush1.msra.mxu0 0.0
    %295 = vmatprep.subr.mxu0 0.0
    %296 = vmatpush1.msra.mxu0 0.0
    %297 = vmatprep.subr.mxu0 0.0
    %298 = vmatpush1.msra.mxu0 0.0
    %299 = vmatprep.mubr.f32.mxu0 0.0
    %300 = vmatmul.mubr.f32.gmra.mrb[0].mxu0 0.0
    %v301 = vpop.f32.mrb[0].mxu0
    %v302 = vadd.f32 0.0, %v301
    %v303 = vpop.f32.mrb[0].mxu0
    %304 = vdwg.mxu0
    %v305 = vadd.f32 %v234, %v302
    %v306 = vtanh.pop %v305
    %307 = vst [vmem:[#allocation2] sm:$0xff] %v306
    %s308 = scalar_lea.vmem [#allocation2], 8
    %v309 = vld [vmem:[%s308] sm:$0xff]
    %310 = vmatprep.subr.mxu0 0.0
    %311 = vmatpush1.msra.mxu0 %v218
    %312 = vmatprep.subr.mxu0 0.0
    %313 = vmatpush1.msra.mxu0 %v219
    %314 = vmatprep.subr.mxu0 0.0
    %315 = vmatpush1.msra.mxu0 %v220
    %316 = vmatprep.subr.mxu0 0.0
    %317 = vmatpush1.msra.mxu0 %v221
    %318 = vmatprep.subr.mxu0 0.0
    %319 = vmatpush1.msra.mxu0 %v222
    %320 = vmatprep.subr.mxu0 0.0
    %321 = vmatpush1.msra.mxu0 %v223
    %322 = vmatprep.subr.mxu0 0.0
    %323 = vmatpush1.msra.mxu0 %v224
    %324 = vmatprep.subr.mxu0 0.0
    %325 = vmatpush1.msra.mxu0 %v225
    %326 = vmatprep.subr.mxu0 0.0
    %327 = vmatpush1.msra.mxu0 %v226
    %328 = vmatprep.subr.mxu0 0.0
    %329 = vmatpush1.msra.mxu0 %v227
    %330 = vmatprep.subr.mxu0 0.0
    %331 = vmatpush1.msra.mxu0 %v228
    %332 = vmatprep.subr.mxu0 0.0
    %333 = vmatpush1.msra.mxu0 %v229
    %334 = vmatprep.subr.mxu0 0.0
    %335 = vmatpush1.msra.mxu0 %v230
    %336 = vmatprep.subr.mxu0 0.0
    %337 = vmatpush1.msra.mxu0 %v231
    %338 = vmatprep.subr.mxu0 0.0
    %339 = vmatpush1.msra.mxu0 %v232
    %340 = vmatprep.subr.mxu0 0.0
    %341 = vmatpush1.msra.mxu0 %v233
    %342 = vmatprep.subr.mxu0 0.0
    %343 = vmatpush1.msra.mxu0 0.0
    %344 = vmatprep.subr.mxu0 0.0
    %345 = vmatpush1.msra.mxu0 0.0
    %346 = vmatprep.subr.mxu0 0.0
    %347 = vmatpush1.msra.mxu0 0.0
    %348 = vmatprep.subr.mxu0 0.0
    %349 = vmatpush1.msra.mxu0 0.0
    %350 = vmatprep.subr.mxu0 0.0
    %351 = vmatpush1.msra.mxu0 0.0
    %352 = vmatprep.subr.mxu0 0.0
    %353 = vmatpush1.msra.mxu0 0.0
    %354 = vmatprep.subr.mxu0 0.0
    %355 = vmatpush1.msra.mxu0 0.0
    %356 = vmatprep.subr.mxu0 0.0
    %357 = vmatpush1.msra.mxu0 0.0
    %358 = vmatprep.subr.mxu0 0.0
    %359 = vmatpush1.msra.mxu0 0.0
    %360 = vmatprep.subr.mxu0 0.0
    %361 = vmatpush1.msra.mxu0 0.0
    %362 = vmatprep.subr.mxu0 0.0
    %363 = vmatpush1.msra.mxu0 0.0
    %364 = vmatprep.subr.mxu0 0.0
    %365 = vmatpush1.msra.mxu0 0.0
    %366 = vmatprep.subr.mxu0 0.0
    %367 = vmatpush1.msra.mxu0 0.0
    %368 = vmatprep.subr.mxu0 0.0
    %369 = vmatpush1.msra.mxu0 0.0
    %370 = vmatprep.subr.mxu0 0.0
    %371 = vmatpush1.msra.mxu0 0.0
    %372 = vmatprep.subr.mxu0 0.0
    %373 = vmatpush1.msra.mxu0 0.0
    %374 = vmatprep.mubr.f32.mxu0 0.0
    %375 = vmatmul.mubr.f32.gmra.mrb[0].mxu0 %v306
    %v376 = vpop.f32.mrb[0].mxu0
    %v377 = vadd.f32 0.0, %v376
    %v378 = vpop.f32.mrb[0].mxu0
    %379 = vdwg.mxu0
    %v380 = vadd.f32 %v309, %v377
    %v381 = vtanh.pop %v380
    %382 = vst [vmem:[%s308] sm:$0xff] %v381
    %s383 = scalar_lea.vmem [#allocation2], 16
    %v384 = vld [vmem:[%s383] sm:$0xff]
    %385 = vmatprep.subr.mxu0 0.0
    %386 = vmatpush1.msra.mxu0 %v218
    %387 = vmatprep.subr.mxu0 0.0
    %388 = vmatpush1.msra.mxu0 %v219
    %389 = vmatprep.subr.mxu0 0.0
    %390 = vmatpush1.msra.mxu0 %v220
    %391 = vmatprep.subr.mxu0 0.0
    %392 = vmatpush1.msra.mxu0 %v221
    %393 = vmatprep.subr.mxu0 0.0
    %394 = vmatpush1.msra.mxu0 %v222
    %395 = vmatprep.subr.mxu0 0.0
    %396 = vmatpush1.msra.mxu0 %v223
    %397 = vmatprep.subr.mxu0 0.0
    %398 = vmatpush1.msra.mxu0 %v224
    %399 = vmatprep.subr.mxu0 0.0
    %400 = vmatpush1.msra.mxu0 %v225
    %401 = vmatprep.subr.mxu0 0.0
    %402 = vmatpush1.msra.mxu0 %v226
    %403 = vmatprep.subr.mxu0 0.0
    %404 = vmatpush1.msra.mxu0 %v227
    %405 = vmatprep.subr.mxu0 0.0
    %406 = vmatpush1.msra.mxu0 %v228
    %407 = vmatprep.subr.mxu0 0.0
    %408 = vmatpush1.msra.mxu0 %v229
    %409 = vmatprep.subr.mxu0 0.0
    %410 = vmatpush1.msra.mxu0 %v230
    %411 = vmatprep.subr.mxu0 0.0
    %412 = vmatpush1.msra.mxu0 %v231
    %413 = vmatprep.subr.mxu0 0.0
    %414 = vmatpush1.msra.mxu0 %v232
    %415 = vmatprep.subr.mxu0 0.0
    %416 = vmatpush1.msra.mxu0 %v233
    %417 = vmatprep.subr.mxu0 0.0
    %418 = vmatpush1.msra.mxu0 0.0
    %419 = vmatprep.subr.mxu0 0.0
    %420 = vmatpush1.msra.mxu0 0.0
    %421 = vmatprep.subr.mxu0 0.0
    %422 = vmatpush1.msra.mxu0 0.0
    %423 = vmatprep.subr.mxu0 0.0
    %424 = vmatpush1.msra.mxu0 0.0
    %425 = vmatprep.subr.mxu0 0.0
    %426 = vmatpush1.msra.mxu0 0.0
    %427 = vmatprep.subr.mxu0 0.0
    %428 = vmatpush1.msra.mxu0 0.0
    %429 = vmatprep.subr.mxu0 0.0
    %430 = vmatpush1.msra.mxu0 0.0
    %431 = vmatprep.subr.mxu0 0.0
    %432 = vmatpush1.msra.mxu0 0.0
    %433 = vmatprep.subr.mxu0 0.0
    %434 = vmatpush1.msra.mxu0 0.0
    %435 = vmatprep.subr.mxu0 0.0
    %436 = vmatpush1.msra.mxu0 0.0
    %437 = vmatprep.subr.mxu0 0.0
    %438 = vmatpush1.msra.mxu0 0.0
    %439 = vmatprep.subr.mxu0 0.0
    %440 = vmatpush1.msra.mxu0 0.0
    %441 = vmatprep.subr.mxu0 0.0
    %442 = vmatpush1.msra.mxu0 0.0
    %443 = vmatprep.subr.mxu0 0.0
    %444 = vmatpush1.msra.mxu0 0.0
    %445 = vmatprep.subr.mxu0 0.0
    %446 = vmatpush1.msra.mxu0 0.0
    %447 = vmatprep.subr.mxu0 0.0
    %448 = vmatpush1.msra.mxu0 0.0
    %449 = vmatprep.mubr.f32.mxu0 0.0
    %450 = vmatmul.mubr.f32.gmra.mrb[0].mxu0 %v381
    %v451 = vpop.f32.mrb[0].mxu0
    %v452 = vadd.f32 0.0, %v451
    %v453 = vpop.f32.mrb[0].mxu0
    %454 = vdwg.mxu0
    %v455 = vadd.f32 %v384, %v452
    %v456 = vtanh.pop %v455
    %457 = vst [vmem:[%s383] sm:$0xff] %v456
    %s458 = scalar_lea.vmem [#allocation2], 24
    %v459 = vld [vmem:[%s458] sm:$0xff]
    %460 = vmatprep.subr.mxu0 0.0
    %461 = vmatpush1.msra.mxu0 %v218
    %462 = vmatprep.subr.mxu0 0.0
    %463 = vmatpush1.msra.mxu0 %v219
    %464 = vmatprep.subr.mxu0 0.0
    %465 = vmatpush1.msra.mxu0 %v220
    %466 = vmatprep.subr.mxu0 0.0
    %467 = vmatpush1.msra.mxu0 %v221
    %468 = vmatprep.subr.mxu0 0.0
    %469 = vmatpush1.msra.mxu0 %v222
    %470 = vmatprep.subr.mxu0 0.0
    %471 = vmatpush1.msra.mxu0 %v223
    %472 = vmatprep.subr.mxu0 0.0
    %473 = vmatpush1.msra.mxu0 %v224
    %474 = vmatprep.subr.mxu0 0.0
    %475 = vmatpush1.msra.mxu0 %v225
    %476 = vmatprep.subr.mxu0 0.0
    %477 = vmatpush1.msra.mxu0 %v226
    %478 = vmatprep.subr.mxu0 0.0
    %479 = vmatpush1.msra.mxu0 %v227
    %480 = vmatprep.subr.mxu0 0.0
    %481 = vmatpush1.msra.mxu0 %v228
    %482 = vmatprep.subr.mxu0 0.0
    %483 = vmatpush1.msra.mxu0 %v229
    %484 = vmatprep.subr.mxu0 0.0
    %485 = vmatpush1.msra.mxu0 %v230
    %486 = vmatprep.subr.mxu0 0.0
    %487 = vmatpush1.msra.mxu0 %v231
    %488 = vmatprep.subr.mxu0 0.0
    %489 = vmatpush1.msra.mxu0 %v232
    %490 = vmatprep.subr.mxu0 0.0
    %491 = vmatpush1.msra.mxu0 %v233
    %492 = vmatprep.subr.mxu0 0.0
    %493 = vmatpush1.msra.mxu0 0.0
    %494 = vmatprep.subr.mxu0 0.0
    %495 = vmatpush1.msra.mxu0 0.0
    %496 = vmatprep.subr.mxu0 0.0
    %497 = vmatpush1.msra.mxu0 0.0
    %498 = vmatprep.subr.mxu0 0.0
    %499 = vmatpush1.msra.mxu0 0.0
    %500 = vmatprep.subr.mxu0 0.0
    %501 = vmatpush1.msra.mxu0 0.0
    %502 = vmatprep.subr.mxu0 0.0
    %503 = vmatpush1.msra.mxu0 0.0
    %504 = vmatprep.subr.mxu0 0.0
    %505 = vmatpush1.msra.mxu0 0.0
    %506 = vmatprep.subr.mxu0 0.0
    %507 = vmatpush1.msra.mxu0 0.0
    %508 = vmatprep.subr.mxu0 0.0
    %509 = vmatpush1.msra.mxu0 0.0
    %510 = vmatprep.subr.mxu0 0.0
    %511 = vmatpush1.msra.mxu0 0.0
    %512 = vmatprep.subr.mxu0 0.0
    %513 = vmatpush1.msra.mxu0 0.0
    %514 = vmatprep.subr.mxu0 0.0
    %515 = vmatpush1.msra.mxu0 0.0
    %516 = vmatprep.subr.mxu0 0.0
    %517 = vmatpush1.msra.mxu0 0.0
    %518 = vmatprep.subr.mxu0 0.0
    %519 = vmatpush1.msra.mxu0 0.0
    %520 = vmatprep.subr.mxu0 0.0
    %521 = vmatpush1.msra.mxu0 0.0
    %522 = vmatprep.subr.mxu0 0.0
    %523 = vmatpush1.msra.mxu0 0.0
    %524 = vmatprep.mubr.f32.mxu0 0.0
    %525 = vmatmul.mubr.f32.gmra.mrb[0].mxu0 %v456
    %v526 = vpop.f32.mrb[0].mxu0
    %v527 = vadd.f32 0.0, %v526
    %v528 = vpop.f32.mrb[0].mxu0
    %529 = vdwg.mxu0
    %v530 = vadd.f32 %v459, %v527
    %v531 = vtanh.pop %v530
    %532 = vst [vmem:[%s458] sm:$0xff] %v531
    %s533 = scalar_lea.vmem [#allocation2], 32
    %v534 = vld [vmem:[%s533] sm:$0xff]
    %535 = vmatprep.subr.mxu0 0.0
    %536 = vmatpush1.msra.mxu0 %v218
    %537 = vmatprep.subr.mxu0 0.0
    %538 = vmatpush1.msra.mxu0 %v219
    %539 = vmatprep.subr.mxu0 0.0
    %540 = vmatpush1.msra.mxu0 %v220
    %541 = vmatprep.subr.mxu0 0.0
    %542 = vmatpush1.msra.mxu0 %v221
    %543 = vmatprep.subr.mxu0 0.0
    %544 = vmatpush1.msra.mxu0 %v222
    %545 = vmatprep.subr.mxu0 0.0
    %546 = vmatpush1.msra.mxu0 %v223
    %547 = vmatprep.subr.mxu0 0.0
    %548 = vmatpush1.msra.mxu0 %v224
    %549 = vmatprep.subr.mxu0 0.0
    %550 = vmatpush1.msra.mxu0 %v225
    %551 = vmatprep.subr.mxu0 0.0
    %552 = vmatpush1.msra.mxu0 %v226
    %553 = vmatprep.subr.mxu0 0.0
    %554 = vmatpush1.msra.mxu0 %v227
    %555 = vmatprep.subr.mxu0 0.0
    %556 = vmatpush1.msra.mxu0 %v228
    %557 = vmatprep.subr.mxu0 0.0
    %558 = vmatpush1.msra.mxu0 %v229
    %559 = vmatprep.subr.mxu0 0.0
    %560 = vmatpush1.msra.mxu0 %v230
    %561 = vmatprep.subr.mxu0 0.0
    %562 = vmatpush1.msra.mxu0 %v231
    %563 = vmatprep.subr.mxu0 0.0
    %564 = vmatpush1.msra.mxu0 %v232
    %565 = vmatprep.subr.mxu0 0.0
    %566 = vmatpush1.msra.mxu0 %v233
    %567 = vmatprep.subr.mxu0 0.0
    %568 = vmatpush1.msra.mxu0 0.0
    %569 = vmatprep.subr.mxu0 0.0
    %570 = vmatpush1.msra.mxu0 0.0
    %571 = vmatprep.subr.mxu0 0.0
    %572 = vmatpush1.msra.mxu0 0.0
    %573 = vmatprep.subr.mxu0 0.0
    %574 = vmatpush1.msra.mxu0 0.0
    %575 = vmatprep.subr.mxu0 0.0
    %576 = vmatpush1.msra.mxu0 0.0
    %577 = vmatprep.subr.mxu0 0.0
    %578 = vmatpush1.msra.mxu0 0.0
    %579 = vmatprep.subr.mxu0 0.0
    %580 = vmatpush1.msra.mxu0 0.0
    %581 = vmatprep.subr.mxu0 0.0
    %582 = vmatpush1.msra.mxu0 0.0
    %583 = vmatprep.subr.mxu0 0.0
    %584 = vmatpush1.msra.mxu0 0.0
    %585 = vmatprep.subr.mxu0 0.0
    %586 = vmatpush1.msra.mxu0 0.0
    %587 = vmatprep.subr.mxu0 0.0
    %588 = vmatpush1.msra.mxu0 0.0
    %589 = vmatprep.subr.mxu0 0.0
    %590 = vmatpush1.msra.mxu0 0.0
    %591 = vmatprep.subr.mxu0 0.0
    %592 = vmatpush1.msra.mxu0 0.0
    %593 = vmatprep.subr.mxu0 0.0
    %594 = vmatpush1.msra.mxu0 0.0
    %595 = vmatprep.subr.mxu0 0.0
    %596 = vmatpush1.msra.mxu0 0.0
    %597 = vmatprep.subr.mxu0 0.0
    %598 = vmatpush1.msra.mxu0 0.0
    %599 = vmatprep.mubr.f32.mxu0 0.0
    %600 = vmatmul.mubr.f32.gmra.mrb[0].mxu0 %v531
    %v601 = vpop.f32.mrb[0].mxu0
    %v602 = vadd.f32 0.0, %v601
    %v603 = vpop.f32.mrb[0].mxu0
    %604 = vdwg.mxu0
    %v605 = vadd.f32 %v534, %v602
    %v606 = vtanh.pop %v605
    %607 = vst [vmem:[%s533] sm:$0xff] %v606
    %s608 = scalar_lea.vmem [#allocation2], 40
    %v609 = vld [vmem:[%s608] sm:$0xff]
    %610 = vmatprep.subr.mxu0 0.0
    %611 = vmatpush1.msra.mxu0 %v218
    %612 = vmatprep.subr.mxu0 0.0
    %613 = vmatpush1.msra.mxu0 %v219
    %614 = vmatprep.subr.mxu0 0.0
    %615 = vmatpush1.msra.mxu0 %v220
    %616 = vmatprep.subr.mxu0 0.0
    %617 = vmatpush1.msra.mxu0 %v221
    %618 = vmatprep.subr.mxu0 0.0
    %619 = vmatpush1.msra.mxu0 %v222
    %620 = vmatprep.subr.mxu0 0.0
    %621 = vmatpush1.msra.mxu0 %v223
    %622 = vmatprep.subr.mxu0 0.0
    %623 = vmatpush1.msra.mxu0 %v224
    %624 = vmatprep.subr.mxu0 0.0
    %625 = vmatpush1.msra.mxu0 %v225
    %626 = vmatprep.subr.mxu0 0.0
    %627 = vmatpush1.msra.mxu0 %v226
    %628 = vmatprep.subr.mxu0 0.0
    %629 = vmatpush1.msra.mxu0 %v227
    %630 = vmatprep.subr.mxu0 0.0
    %631 = vmatpush1.msra.mxu0 %v228
    %632 = vmatprep.subr.mxu0 0.0
    %633 = vmatpush1.msra.mxu0 %v229
    %634 = vmatprep.subr.mxu0 0.0
    %635 = vmatpush1.msra.mxu0 %v230
    %636 = vmatprep.subr.mxu0 0.0
    %637 = vmatpush1.msra.mxu0 %v231
    %638 = vmatprep.subr.mxu0 0.0
    %639 = vmatpush1.msra.mxu0 %v232
    %640 = vmatprep.subr.mxu0 0.0
    %641 = vmatpush1.msra.mxu0 %v233
    %642 = vmatprep.subr.mxu0 0.0
    %643 = vmatpush1.msra.mxu0 0.0
    %644 = vmatprep.subr.mxu0 0.0
    %645 = vmatpush1.msra.mxu0 0.0
    %646 = vmatprep.subr.mxu0 0.0
    %647 = vmatpush1.msra.mxu0 0.0
    %648 = vmatprep.subr.mxu0 0.0
    %649 = vmatpush1.msra.mxu0 0.0
    %650 = vmatprep.subr.mxu0 0.0
    %651 = vmatpush1.msra.mxu0 0.0
    %652 = vmatprep.subr.mxu0 0.0
    %653 = vmatpush1.msra.mxu0 0.0
    %654 = vmatprep.subr.mxu0 0.0
    %655 = vmatpush1.msra.mxu0 0.0
    %656 = vmatprep.subr.mxu0 0.0
    %657 = vmatpush1.msra.mxu0 0.0
    %658 = vmatprep.subr.mxu0 0.0
    %659 = vmatpush1.msra.mxu0 0.0
    %660 = vmatprep.subr.mxu0 0.0
    %661 = vmatpush1.msra.mxu0 0.0
    %662 = vmatprep.subr.mxu0 0.0
    %663 = vmatpush1.msra.mxu0 0.0
    %664 = vmatprep.subr.mxu0 0.0
    %665 = vmatpush1.msra.mxu0 0.0
    %666 = vmatprep.subr.mxu0 0.0
    %667 = vmatpush1.msra.mxu0 0.0
    %668 = vmatprep.subr.mxu0 0.0
    %669 = vmatpush1.msra.mxu0 0.0
    %670 = vmatprep.subr.mxu0 0.0
    %671 = vmatpush1.msra.mxu0 0.0
    %672 = vmatprep.subr.mxu0 0.0
    %673 = vmatpush1.msra.mxu0 0.0
    %674 = vmatprep.mubr.f32.mxu0 0.0
    %675 = vmatmul.mubr.f32.gmra.mrb[0].mxu0 %v606
    %v676 = vpop.f32.mrb[0].mxu0
    %v677 = vadd.f32 0.0, %v676
    %v678 = vpop.f32.mrb[0].mxu0
    %679 = vdwg.mxu0
    %v680 = vadd.f32 %v609, %v677
    %v681 = vtanh.pop %v680
    %682 = vst [vmem:[%s608] sm:$0xff] %v681
    %s683 = scalar_lea.vmem [#allocation2], 48
    %v684 = vld [vmem:[%s683] sm:$0xff]
    %685 = vmatprep.subr.mxu0 0.0
    %686 = vmatpush1.msra.mxu0 %v218
    %687 = vmatprep.subr.mxu0 0.0
    %688 = vmatpush1.msra.mxu0 %v219
    %689 = vmatprep.subr.mxu0 0.0
    %690 = vmatpush1.msra.mxu0 %v220
    %691 = vmatprep.subr.mxu0 0.0
    %692 = vmatpush1.msra.mxu0 %v221
    %693 = vmatprep.subr.mxu0 0.0
    %694 = vmatpush1.msra.mxu0 %v222
    %695 = vmatprep.subr.mxu0 0.0
    %696 = vmatpush1.msra.mxu0 %v223
    %697 = vmatprep.subr.mxu0 0.0
    %698 = vmatpush1.msra.mxu0 %v224
    %699 = vmatprep.subr.mxu0 0.0
    %700 = vmatpush1.msra.mxu0 %v225
    %701 = vmatprep.subr.mxu0 0.0
    %702 = vmatpush1.msra.mxu0 %v226
    %703 = vmatprep.subr.mxu0 0.0
    %704 = vmatpush1.msra.mxu0 %v227
    %705 = vmatprep.subr.mxu0 0.0
    %706 = vmatpush1.msra.mxu0 %v228
    %707 = vmatprep.subr.mxu0 0.0
    %708 = vmatpush1.msra.mxu0 %v229
    %709 = vmatprep.subr.mxu0 0.0
    %710 = vmatpush1.msra.mxu0 %v230
    %711 = vmatprep.subr.mxu0 0.0
    %712 = vmatpush1.msra.mxu0 %v231
    %713 = vmatprep.subr.mxu0 0.0
    %714 = vmatpush1.msra.mxu0 %v232
    %715 = vmatprep.subr.mxu0 0.0
    %716 = vmatpush1.msra.mxu0 %v233
    %717 = vmatprep.subr.mxu0 0.0
    %718 = vmatpush1.msra.mxu0 0.0
    %719 = vmatprep.subr.mxu0 0.0
    %720 = vmatpush1.msra.mxu0 0.0
    %721 = vmatprep.subr.mxu0 0.0
    %722 = vmatpush1.msra.mxu0 0.0
    %723 = vmatprep.subr.mxu0 0.0
    %724 = vmatpush1.msra.mxu0 0.0
    %725 = vmatprep.subr.mxu0 0.0
    %726 = vmatpush1.msra.mxu0 0.0
    %727 = vmatprep.subr.mxu0 0.0
    %728 = vmatpush1.msra.mxu0 0.0
    %729 = vmatprep.subr.mxu0 0.0
    %730 = vmatpush1.msra.mxu0 0.0
    %731 = vmatprep.subr.mxu0 0.0
    %732 = vmatpush1.msra.mxu0 0.0
    %733 = vmatprep.subr.mxu0 0.0
    %734 = vmatpush1.msra.mxu0 0.0
    %735 = vmatprep.subr.mxu0 0.0
    %736 = vmatpush1.msra.mxu0 0.0
    %737 = vmatprep.subr.mxu0 0.0
    %738 = vmatpush1.msra.mxu0 0.0
    %739 = vmatprep.subr.mxu0 0.0
    %740 = vmatpush1.msra.mxu0 0.0
    %741 = vmatprep.subr.mxu0 0.0
    %742 = vmatpush1.msra.mxu0 0.0
    %743 = vmatprep.subr.mxu0 0.0
    %744 = vmatpush1.msra.mxu0 0.0
    %745 = vmatprep.subr.mxu0 0.0
    %746 = vmatpush1.msra.mxu0 0.0
    %747 = vmatprep.subr.mxu0 0.0
    %748 = vmatpush1.msra.mxu0 0.0
    %749 = vmatprep.mubr.f32.mxu0 0.0
    %750 = vmatmul.mubr.f32.gmra.mrb[0].mxu0 %v681
    %v751 = vpop.f32.mrb[0].mxu0
    %v752 = vadd.f32 0.0, %v751
    %v753 = vpop.f32.mrb[0].mxu0
    %754 = vdwg.mxu0
    %v755 = vadd.f32 %v684, %v752
    %v756 = vtanh.pop %v755
    %757 = vst [vmem:[%s683] sm:$0xff] %v756
    %s758 = scalar_lea.vmem [#allocation2], 56
    %v759 = vld [vmem:[%s758] sm:$0xff]
    %760 = vmatprep.subr.mxu0 0.0
    %761 = vmatpush1.msra.mxu0 %v218
    %762 = vmatprep.subr.mxu0 0.0
    %763 = vmatpush1.msra.mxu0 %v219
    %764 = vmatprep.subr.mxu0 0.0
    %765 = vmatpush1.msra.mxu0 %v220
    %766 = vmatprep.subr.mxu0 0.0
    %767 = vmatpush1.msra.mxu0 %v221
    %768 = vmatprep.subr.mxu0 0.0
    %769 = vmatpush1.msra.mxu0 %v222
    %770 = vmatprep.subr.mxu0 0.0
    %771 = vmatpush1.msra.mxu0 %v223
    %772 = vmatprep.subr.mxu0 0.0
    %773 = vmatpush1.msra.mxu0 %v224
    %774 = vmatprep.subr.mxu0 0.0
    %775 = vmatpush1.msra.mxu0 %v225
    %776 = vmatprep.subr.mxu0 0.0
    %777 = vmatpush1.msra.mxu0 %v226
    %778 = vmatprep.subr.mxu0 0.0
    %779 = vmatpush1.msra.mxu0 %v227
    %780 = vmatprep.subr.mxu0 0.0
    %781 = vmatpush1.msra.mxu0 %v228
    %782 = vmatprep.subr.mxu0 0.0
    %783 = vmatpush1.msra.mxu0 %v229
    %784 = vmatprep.subr.mxu0 0.0
    %785 = vmatpush1.msra.mxu0 %v230
    %786 = vmatprep.subr.mxu0 0.0
    %787 = vmatpush1.msra.mxu0 %v231
    %788 = vmatprep.subr.mxu0 0.0
    %789 = vmatpush1.msra.mxu0 %v232
    %790 = vmatprep.subr.mxu0 0.0
    %791 = vmatpush1.msra.mxu0 %v233
    %792 = vmatprep.subr.mxu0 0.0
    %793 = vmatpush1.msra.mxu0 0.0
    %794 = vmatprep.subr.mxu0 0.0
    %795 = vmatpush1.msra.mxu0 0.0
    %796 = vmatprep.subr.mxu0 0.0
    %797 = vmatpush1.msra.mxu0 0.0
    %798 = vmatprep.subr.mxu0 0.0
    %799 = vmatpush1.msra.mxu0 0.0
    %800 = vmatprep.subr.mxu0 0.0
    %801 = vmatpush1.msra.mxu0 0.0
    %802 = vmatprep.subr.mxu0 0.0
    %803 = vmatpush1.msra.mxu0 0.0
    %804 = vmatprep.subr.mxu0 0.0
    %805 = vmatpush1.msra.mxu0 0.0
    %806 = vmatprep.subr.mxu0 0.0
    %807 = vmatpush1.msra.mxu0 0.0
    %808 = vmatprep.subr.mxu0 0.0
    %809 = vmatpush1.msra.mxu0 0.0
    %810 = vmatprep.subr.mxu0 0.0
    %811 = vmatpush1.msra.mxu0 0.0
    %812 = vmatprep.subr.mxu0 0.0
    %813 = vmatpush1.msra.mxu0 0.0
    %814 = vmatprep.subr.mxu0 0.0
    %815 = vmatpush1.msra.mxu0 0.0
    %816 = vmatprep.subr.mxu0 0.0
    %817 = vmatpush1.msra.mxu0 0.0
    %818 = vmatprep.subr.mxu0 0.0
    %819 = vmatpush1.msra.mxu0 0.0
    %820 = vmatprep.subr.mxu0 0.0
    %821 = vmatpush1.msra.mxu0 0.0
    %822 = vmatprep.subr.mxu0 0.0
    %823 = vmatpush1.msra.mxu0 0.0
    %824 = vmatprep.mubr.f32.mxu0 0.0
    %825 = vmatmul.mubr.f32.gmra.mrb[0].mxu0 %v756
    %v826 = vpop.f32.mrb[0].mxu0
    %v827 = vadd.f32 0.0, %v826
    %v828 = vpop.f32.mrb[0].mxu0
    %829 = vdwg.mxu0
    %v830 = vadd.f32 %v759, %v827
    %v831 = vtanh.pop %v830
    %832 = vst [vmem:[%s758] sm:$0xff] %v831
    %v833 = vld [vmem:[#allocation2] sm:$0xff]
    %v834 = vld [vmem:[#allocation2 + $0x8] sm:$0xff]
    %v835 = vld [vmem:[#allocation2 + $0x10] sm:$0xff]
    %v836 = vld [vmem:[#allocation2 + $0x18] sm:$0xff]
    %v837 = vld [vmem:[#allocation2 + $0x20] sm:$0xff]
    %v838 = vld [vmem:[#allocation2 + $0x28] sm:$0xff]
    %v839 = vld [vmem:[#allocation2 + $0x30] sm:$0xff]
    %v840 = vld [vmem:[#allocation2 + $0x38] sm:$0xff]
    %v841 = vpack.c.bf16 %v834, %v833
    %v842 = vpack.c.bf16 %v836, %v835
    %v843 = vpack.c.bf16 %v838, %v837
    %v844 = vpack.c.bf16 %v840, %v839
    %v845 = vld [vmem:[#allocation8] sm:$0xf]
    %v846 = vld [vmem:[#allocation8 + $0x4] sm:$0xf]
    %v847 = vld [vmem:[#allocation8 + $0x8] sm:$0xf]
    %v848 = vld [vmem:[#allocation8 + $0xc] sm:$0xf]
    %v849 = vld [vmem:[#allocation8 + $0x10] sm:$0xf]
    %v850 = vld [vmem:[#allocation8 + $0x14] sm:$0xf]
    %v851 = vld [vmem:[#allocation8 + $0x18] sm:$0xf]
    %v852 = vld [vmem:[#allocation8 + $0x1c] sm:$0xf]
    %v853 = vld [vmem:[#allocation8 + $0x20] sm:$0xf]
    %v854 = vld [vmem:[#allocation8 + $0x24] sm:$0xf]
    %v855 = vld [vmem:[#allocation8 + $0x28] sm:$0xf]
    %v856 = vld [vmem:[#allocation8 + $0x2c] sm:$0xf]
    %v857 = vld [vmem:[#allocation8 + $0x30] sm:$0xf]
    %v858 = vld [vmem:[#allocation8 + $0x34] sm:$0xf]
    %v859 = vld [vmem:[#allocation8 + $0x38] sm:$0xf]
    %v860 = vld [vmem:[#allocation8 + $0x3c] sm:$0xf]
    %v861 = vld [vmem:[%s6] sm:$0x1]
    %v863 = vlaneseq
    %v864 = vshrl.u32 %v863, 7
    %v865 = vsub.s32 0, %v864
    %v866 = vrot.slane %v861, %v865
    %v884 = vunpack.c.l.b16 %v845
    %v885 = vunpack.c.l.b16 %v846
    %v886 = vunpack.c.l.b16 %v847
    %v887 = vunpack.c.l.b16 %v848
    %v888 = vunpack.c.l.b16 %v849
    %v889 = vunpack.c.l.b16 %v850
    %v890 = vunpack.c.l.b16 %v851
    %v891 = vunpack.c.l.b16 %v852
    %v892 = vunpack.c.l.b16 %v853
    %v893 = vunpack.c.l.b16 %v854
    %v894 = vunpack.c.l.b16 %v855
    %v895 = vunpack.c.l.b16 %v856
    %v896 = vunpack.c.l.b16 %v857
    %v897 = vunpack.c.l.b16 %v858
    %v898 = vunpack.c.l.b16 %v859
    %v899 = vunpack.c.l.b16 %v860
    %v900 = vpack.c.b16 %v885, %v884
    %v901 = vpack.c.b16 %v887, %v886
    %v902 = vpack.c.b16 %v889, %v888
    %v903 = vpack.c.b16 %v891, %v890
    %v904 = vpack.c.b16 %v893, %v892
    %v905 = vpack.c.b16 %v895, %v894
    %v906 = vpack.c.b16 %v897, %v896
    %v907 = vpack.c.b16 %v899, %v898
    %916 = vmatprep.subr.bf16.mxu0 0
    %917 = vmatpush1.bf16.msra.mxu0 %v900
    %918 = vmatprep.subr.bf16.mxu0 0
    %919 = vmatpush1.bf16.msra.mxu0 %v901
    %920 = vmatprep.subr.bf16.mxu0 0
    %921 = vmatpush1.bf16.msra.mxu0 %v902
    %922 = vmatprep.subr.bf16.mxu0 0
    %923 = vmatpush1.bf16.msra.mxu0 %v903
    %924 = vmatprep.subr.bf16.mxu0 0
    %925 = vmatpush1.bf16.msra.mxu0 %v904
    %926 = vmatprep.subr.bf16.mxu0 0
    %927 = vmatpush1.bf16.msra.mxu0 %v905
    %928 = vmatprep.subr.bf16.mxu0 0
    %929 = vmatpush1.bf16.msra.mxu0 %v906
    %930 = vmatprep.subr.bf16.mxu0 0
    %931 = vmatpush1.bf16.msra.mxu0 %v907
    %932 = vmatprep.subr.bf16.mxu0 0
    %933 = vmatpush1.bf16.msra.mxu0 0
    %934 = vmatprep.subr.bf16.mxu0 0
    %935 = vmatpush1.bf16.msra.mxu0 0
    %936 = vmatprep.subr.bf16.mxu0 0
    %937 = vmatpush1.bf16.msra.mxu0 0
    %938 = vmatprep.subr.bf16.mxu0 0
    %939 = vmatpush1.bf16.msra.mxu0 0
    %940 = vmatprep.subr.bf16.mxu0 0
    %941 = vmatpush1.bf16.msra.mxu0 0
    %942 = vmatprep.subr.bf16.mxu0 0
    %943 = vmatpush1.bf16.msra.mxu0 0
    %944 = vmatprep.subr.bf16.mxu0 0
    %945 = vmatpush1.bf16.msra.mxu0 0
    %946 = vmatprep.subr.bf16.mxu0 0
    %947 = vmatpush1.bf16.msra.mxu0 0
    %948 = vmatprep.mubr.bf16.mxu0 0
    %949 = vmatmul.mubr.bf16.gmra.mrb[0].mxu0 %v841
    %v950 = vpop.f32.mrb[0].mxu0
    %v951 = vadd.f32 %v866, %v950
    %v952 = vpop.f32.mrb[0].mxu0
    %v953 = vpop.f32.mrb[0].mxu0
    %v954 = vadd.f32 %v866, %v953
    %v955 = vpop.f32.mrb[0].mxu0
    %956 = vmatprep.mubr.bf16.mxu0 0
    %957 = vmatmul.mubr.bf16.gmra.mrb[0].mxu0 %v842
    %v958 = vpop.f32.mrb[0].mxu0
    %v959 = vadd.f32 %v866, %v958
    %v960 = vpop.f32.mrb[0].mxu0
    %v961 = vpop.f32.mrb[0].mxu0
    %v962 = vadd.f32 %v866, %v961
    %v963 = vpop.f32.mrb[0].mxu0
    %964 = vmatprep.mubr.bf16.mxu0 0
    %965 = vmatmul.mubr.bf16.gmra.mrb[0].mxu0 %v843
    %v966 = vpop.f32.mrb[0].mxu0
    %v967 = vadd.f32 %v866, %v966
    %v968 = vpop.f32.mrb[0].mxu0
    %v969 = vpop.f32.mrb[0].mxu0
    %v970 = vadd.f32 %v866, %v969
    %v971 = vpop.f32.mrb[0].mxu0
    %972 = vmatprep.mubr.bf16.mxu0 0
    %973 = vmatmul.mubr.bf16.gmra.mrb[0].mxu0 %v844
    %v974 = vpop.f32.mrb[0].mxu0
    %v975 = vadd.f32 %v866, %v974
    %v976 = vpop.f32.mrb[0].mxu0
    %v977 = vpop.f32.mrb[0].mxu0
    %v978 = vadd.f32 %v866, %v977
    %v979 = vpop.f32.mrb[0].mxu0
    %980 = vdwg.mxu0
    %981 = vst [vmem:[#allocation2] sm:$0xff] %v951
    %982 = vst [vmem:[#allocation2 + $0x8] sm:$0xff] %v954
    %983 = vst [vmem:[#allocation2 + $0x10] sm:$0xff] %v959
    %984 = vst [vmem:[#allocation2 + $0x18] sm:$0xff] %v962
    %985 = vst [vmem:[#allocation2 + $0x20] sm:$0xff] %v967
    %986 = vst [vmem:[#allocation2 + $0x28] sm:$0xff] %v970
    %987 = vst [vmem:[#allocation2 + $0x30] sm:$0xff] %v975
    %988 = vst [vmem:[#allocation2 + $0x38] sm:$0xff] %v978
    %v989 = vld [vmem:[#allocation9] sm:$0xff]
    %v990 = vld [vmem:[#allocation9 + $0x8] sm:$0xff]
    %v991 = vld [vmem:[#allocation9 + $0x10] sm:$0xff]
    %v992 = vld [vmem:[#allocation9 + $0x18] sm:$0xff]
    %v993 = vld [vmem:[#allocation9 + $0x20] sm:$0xff]
    %v994 = vld [vmem:[#allocation9 + $0x28] sm:$0xff]
    %v995 = vld [vmem:[#allocation9 + $0x30] sm:$0xff]
    %v996 = vld [vmem:[#allocation9 + $0x38] sm:$0xff]
    %v997 = vld [vmem:[#allocation9 + $0x40] sm:$0xff]
    %v998 = vld [vmem:[#allocation9 + $0x48] sm:$0xff]
    %v999 = vld [vmem:[#allocation9 + $0x50] sm:$0xff]
    %v1000 = vld [vmem:[#allocation9 + $0x58] sm:$0xff]
    %v1001 = vld [vmem:[#allocation9 + $0x60] sm:$0xff]
    %v1002 = vld [vmem:[#allocation9 + $0x68] sm:$0xff]
    %v1003 = vld [vmem:[#allocation9 + $0x70] sm:$0xff]
    %v1004 = vld [vmem:[#allocation9 + $0x78] sm:$0xff]
    %v1005 = vld [vmem:[#allocation2] sm:$0xff]
    %1006 = vmatprep.subr.mxu0 0.0
    %1007 = vmatpush1.msra.mxu0 %v989
    %1008 = vmatprep.subr.mxu0 0.0
    %1009 = vmatpush1.msra.mxu0 %v990
    %1010 = vmatprep.subr.mxu0 0.0
    %1011 = vmatpush1.msra.mxu0 %v991
    %1012 = vmatprep.subr.mxu0 0.0
    %1013 = vmatpush1.msra.mxu0 %v992
    %1014 = vmatprep.subr.mxu0 0.0
    %1015 = vmatpush1.msra.mxu0 %v993
    %1016 = vmatprep.subr.mxu0 0.0
    %1017 = vmatpush1.msra.mxu0 %v994
    %1018 = vmatprep.subr.mxu0 0.0
    %1019 = vmatpush1.msra.mxu0 %v995
    %1020 = vmatprep.subr.mxu0 0.0
    %1021 = vmatpush1.msra.mxu0 %v996
    %1022 = vmatprep.subr.mxu0 0.0
    %1023 = vmatpush1.msra.mxu0 %v997
    %1024 = vmatprep.subr.mxu0 0.0
    %1025 = vmatpush1.msra.mxu0 %v998
    %1026 = vmatprep.subr.mxu0 0.0
    %1027 = vmatpush1.msra.mxu0 %v999
    %1028 = vmatprep.subr.mxu0 0.0
    %1029 = vmatpush1.msra.mxu0 %v1000
    %1030 = vmatprep.subr.mxu0 0.0
    %1031 = vmatpush1.msra.mxu0 %v1001
    %1032 = vmatprep.subr.mxu0 0.0
    %1033 = vmatpush1.msra.mxu0 %v1002
    %1034 = vmatprep.subr.mxu0 0.0
    %1035 = vmatpush1.msra.mxu0 %v1003
    %1036 = vmatprep.subr.mxu0 0.0
    %1037 = vmatpush1.msra.mxu0 %v1004
    %1038 = vmatprep.subr.mxu0 0.0
    %1039 = vmatpush1.msra.mxu0 0.0
    %1040 = vmatprep.subr.mxu0 0.0
    %1041 = vmatpush1.msra.mxu0 0.0
    %1042 = vmatprep.subr.mxu0 0.0
    %1043 = vmatpush1.msra.mxu0 0.0
    %1044 = vmatprep.subr.mxu0 0.0
    %1045 = vmatpush1.msra.mxu0 0.0
    %1046 = vmatprep.subr.mxu0 0.0
    %1047 = vmatpush1.msra.mxu0 0.0
    %1048 = vmatprep.subr.mxu0 0.0
    %1049 = vmatpush1.msra.mxu0 0.0
    %1050 = vmatprep.subr.mxu0 0.0
    %1051 = vmatpush1.msra.mxu0 0.0
    %1052 = vmatprep.subr.mxu0 0.0
    %1053 = vmatpush1.msra.mxu0 0.0
    %1054 = vmatprep.subr.mxu0 0.0
    %1055 = vmatpush1.msra.mxu0 0.0
    %1056 = vmatprep.subr.mxu0 0.0
    %1057 = vmatpush1.msra.mxu0 0.0
    %1058 = vmatprep.subr.mxu0 0.0
    %1059 = vmatpush1.msra.mxu0 0.0
    %1060 = vmatprep.subr.mxu0 0.0
    %1061 = vmatpush1.msra.mxu0 0.0
    %1062 = vmatprep.subr.mxu0 0.0
    %1063 = vmatpush1.msra.mxu0 0.0
    %1064 = vmatprep.subr.mxu0 0.0
    %1065 = vmatpush1.msra.mxu0 0.0
    %1066 = vmatprep.subr.mxu0 0.0
    %1067 = vmatpush1.msra.mxu0 0.0
    %1068 = vmatprep.subr.mxu0 0.0
    %1069 = vmatpush1.msra.mxu0 0.0
    %1070 = vmatprep.mubr.f32.mxu0 0.0
    %1071 = vmatmul.mubr.f32.gmra.mrb[0].mxu0 0.0
    %v1072 = vpop.f32.mrb[0].mxu0
    %v1073 = vadd.f32 0.0, %v1072
    %v1074 = vpop.f32.mrb[0].mxu0
    %1075 = vdwg.mxu0
    %v1076 = vadd.f32 %v1005, %v1073
    %v1077 = vtanh.pop %v1076
    %1078 = vst [vmem:[#allocation2] sm:$0xff] %v1077
    %v1079 = vld [vmem:[%s308] sm:$0xff]
    %1080 = vmatprep.subr.mxu0 0.0
    %1081 = vmatpush1.msra.mxu0 %v989
    %1082 = vmatprep.subr.mxu0 0.0
    %1083 = vmatpush1.msra.mxu0 %v990
    %1084 = vmatprep.subr.mxu0 0.0
    %1085 = vmatpush1.msra.mxu0 %v991
    %1086 = vmatprep.subr.mxu0 0.0
    %1087 = vmatpush1.msra.mxu0 %v992
    %1088 = vmatprep.subr.mxu0 0.0
    %1089 = vmatpush1.msra.mxu0 %v993
    %1090 = vmatprep.subr.mxu0 0.0
    %1091 = vmatpush1.msra.mxu0 %v994
    %1092 = vmatprep.subr.mxu0 0.0
    %1093 = vmatpush1.msra.mxu0 %v995
    %1094 = vmatprep.subr.mxu0 0.0
    %1095 = vmatpush1.msra.mxu0 %v996
    %1096 = vmatprep.subr.mxu0 0.0
    %1097 = vmatpush1.msra.mxu0 %v997
    %1098 = vmatprep.subr.mxu0 0.0
    %1099 = vmatpush1.msra.mxu0 %v998
    %1100 = vmatprep.subr.mxu0 0.0
    %1101 = vmatpush1.msra.mxu0 %v999
    %1102 = vmatprep.subr.mxu0 0.0
    %1103 = vmatpush1.msra.mxu0 %v1000
    %1104 = vmatprep.subr.mxu0 0.0
    %1105 = vmatpush1.msra.mxu0 %v1001
    %1106 = vmatprep.subr.mxu0 0.0
    %1107 = vmatpush1.msra.mxu0 %v1002
    %1108 = vmatprep.subr.mxu0 0.0
    %1109 = vmatpush1.msra.mxu0 %v1003
    %1110 = vmatprep.subr.mxu0 0.0
    %1111 = vmatpush1.msra.mxu0 %v1004
    %1112 = vmatprep.subr.mxu0 0.0
    %1113 = vmatpush1.msra.mxu0 0.0
    %1114 = vmatprep.subr.mxu0 0.0
    %1115 = vmatpush1.msra.mxu0 0.0
    %1116 = vmatprep.subr.mxu0 0.0
    %1117 = vmatpush1.msra.mxu0 0.0
    %1118 = vmatprep.subr.mxu0 0.0
    %1119 = vmatpush1.msra.mxu0 0.0
    %1120 = vmatprep.subr.mxu0 0.0
    %1121 = vmatpush1.msra.mxu0 0.0
    %1122 = vmatprep.subr.mxu0 0.0
    %1123 = vmatpush1.msra.mxu0 0.0
    %1124 = vmatprep.subr.mxu0 0.0
    %1125 = vmatpush1.msra.mxu0 0.0
    %1126 = vmatprep.subr.mxu0 0.0
    %1127 = vmatpush1.msra.mxu0 0.0
    %1128 = vmatprep.subr.mxu0 0.0
    %1129 = vmatpush1.msra.mxu0 0.0
    %1130 = vmatprep.subr.mxu0 0.0
    %1131 = vmatpush1.msra.mxu0 0.0
    %1132 = vmatprep.subr.mxu0 0.0
    %1133 = vmatpush1.msra.mxu0 0.0
    %1134 = vmatprep.subr.mxu0 0.0
    %1135 = vmatpush1.msra.mxu0 0.0
    %1136 = vmatprep.subr.mxu0 0.0
    %1137 = vmatpush1.msra.mxu0 0.0
    %1138 = vmatprep.subr.mxu0 0.0
    %1139 = vmatpush1.msra.mxu0 0.0
    %1140 = vmatprep.subr.mxu0 0.0
    %1141 = vmatpush1.msra.mxu0 0.0
    %1142 = vmatprep.subr.mxu0 0.0
    %1143 = vmatpush1.msra.mxu0 0.0
    %1144 = vmatprep.mubr.f32.mxu0 0.0
    %1145 = vmatmul.mubr.f32.gmra.mrb[0].mxu0 %v1077
    %v1146 = vpop.f32.mrb[0].mxu0
    %v1147 = vadd.f32 0.0, %v1146
    %v1148 = vpop.f32.mrb[0].mxu0
    %1149 = vdwg.mxu0
    %v1150 = vadd.f32 %v1079, %v1147
    %v1151 = vtanh.pop %v1150
    %1152 = vst [vmem:[%s308] sm:$0xff] %v1151
    %v1153 = vld [vmem:[%s383] sm:$0xff]
    %1154 = vmatprep.subr.mxu0 0.0
    %1155 = vmatpush1.msra.mxu0 %v989
    %1156 = vmatprep.subr.mxu0 0.0
    %1157 = vmatpush1.msra.mxu0 %v990
    %1158 = vmatprep.subr.mxu0 0.0
    %1159 = vmatpush1.msra.mxu0 %v991
    %1160 = vmatprep.subr.mxu0 0.0
    %1161 = vmatpush1.msra.mxu0 %v992
    %1162 = vmatprep.subr.mxu0 0.0
    %1163 = vmatpush1.msra.mxu0 %v993
    %1164 = vmatprep.subr.mxu0 0.0
    %1165 = vmatpush1.msra.mxu0 %v994
    %1166 = vmatprep.subr.mxu0 0.0
    %1167 = vmatpush1.msra.mxu0 %v995
    %1168 = vmatprep.subr.mxu0 0.0
    %1169 = vmatpush1.msra.mxu0 %v996
    %1170 = vmatprep.subr.mxu0 0.0
    %1171 = vmatpush1.msra.mxu0 %v997
    %1172 = vmatprep.subr.mxu0 0.0
    %1173 = vmatpush1.msra.mxu0 %v998
    %1174 = vmatprep.subr.mxu0 0.0
    %1175 = vmatpush1.msra.mxu0 %v999
    %1176 = vmatprep.subr.mxu0 0.0
    %1177 = vmatpush1.msra.mxu0 %v1000
    %1178 = vmatprep.subr.mxu0 0.0
    %1179 = vmatpush1.msra.mxu0 %v1001
    %1180 = vmatprep.subr.mxu0 0.0
    %1181 = vmatpush1.msra.mxu0 %v1002
    %1182 = vmatprep.subr.mxu0 0.0
    %1183 = vmatpush1.msra.mxu0 %v1003
    %1184 = vmatprep.subr.mxu0 0.0
    %1185 = vmatpush1.msra.mxu0 %v1004
    %1186 = vmatprep.subr.mxu0 0.0
    %1187 = vmatpush1.msra.mxu0 0.0
    %1188 = vmatprep.subr.mxu0 0.0
    %1189 = vmatpush1.msra.mxu0 0.0
    %1190 = vmatprep.subr.mxu0 0.0
    %1191 = vmatpush1.msra.mxu0 0.0
    %1192 = vmatprep.subr.mxu0 0.0
    %1193 = vmatpush1.msra.mxu0 0.0
    %1194 = vmatprep.subr.mxu0 0.0
    %1195 = vmatpush1.msra.mxu0 0.0
    %1196 = vmatprep.subr.mxu0 0.0
    %1197 = vmatpush1.msra.mxu0 0.0
    %1198 = vmatprep.subr.mxu0 0.0
    %1199 = vmatpush1.msra.mxu0 0.0
    %1200 = vmatprep.subr.mxu0 0.0
    %1201 = vmatpush1.msra.mxu0 0.0
    %1202 = vmatprep.subr.mxu0 0.0
    %1203 = vmatpush1.msra.mxu0 0.0
    %1204 = vmatprep.subr.mxu0 0.0
    %1205 = vmatpush1.msra.mxu0 0.0
    %1206 = vmatprep.subr.mxu0 0.0
    %1207 = vmatpush1.msra.mxu0 0.0
    %1208 = vmatprep.subr.mxu0 0.0
    %1209 = vmatpush1.msra.mxu0 0.0
    %1210 = vmatprep.subr.mxu0 0.0
    %1211 = vmatpush1.msra.mxu0 0.0
    %1212 = vmatprep.subr.mxu0 0.0
    %1213 = vmatpush1.msra.mxu0 0.0
    %1214 = vmatprep.subr.mxu0 0.0
    %1215 = vmatpush1.msra.mxu0 0.0
    %1216 = vmatprep.subr.mxu0 0.0
    %1217 = vmatpush1.msra.mxu0 0.0
    %1218 = vmatprep.mubr.f32.mxu0 0.0
    %1219 = vmatmul.mubr.f32.gmra.mrb[0].mxu0 %v1151
    %v1220 = vpop.f32.mrb[0].mxu0
    %v1221 = vadd.f32 0.0, %v1220
    %v1222 = vpop.f32.mrb[0].mxu0
    %1223 = vdwg.mxu0
    %v1224 = vadd.f32 %v1153, %v1221
    %v1225 = vtanh.pop %v1224
    %1226 = vst [vmem:[%s383] sm:$0xff] %v1225
    %v1227 = vld [vmem:[%s458] sm:$0xff]
    %1228 = vmatprep.subr.mxu0 0.0
    %1229 = vmatpush1.msra.mxu0 %v989
    %1230 = vmatprep.subr.mxu0 0.0
    %1231 = vmatpush1.msra.mxu0 %v990
    %1232 = vmatprep.subr.mxu0 0.0
    %1233 = vmatpush1.msra.mxu0 %v991
    %1234 = vmatprep.subr.mxu0 0.0
    %1235 = vmatpush1.msra.mxu0 %v992
    %1236 = vmatprep.subr.mxu0 0.0
    %1237 = vmatpush1.msra.mxu0 %v993
    %1238 = vmatprep.subr.mxu0 0.0
    %1239 = vmatpush1.msra.mxu0 %v994
    %1240 = vmatprep.subr.mxu0 0.0
    %1241 = vmatpush1.msra.mxu0 %v995
    %1242 = vmatprep.subr.mxu0 0.0
    %1243 = vmatpush1.msra.mxu0 %v996
    %1244 = vmatprep.subr.mxu0 0.0
    %1245 = vmatpush1.msra.mxu0 %v997
    %1246 = vmatprep.subr.mxu0 0.0
    %1247 = vmatpush1.msra.mxu0 %v998
    %1248 = vmatprep.subr.mxu0 0.0
    %1249 = vmatpush1.msra.mxu0 %v999
    %1250 = vmatprep.subr.mxu0 0.0
    %1251 = vmatpush1.msra.mxu0 %v1000
    %1252 = vmatprep.subr.mxu0 0.0
    %1253 = vmatpush1.msra.mxu0 %v1001
    %1254 = vmatprep.subr.mxu0 0.0
    %1255 = vmatpush1.msra.mxu0 %v1002
    %1256 = vmatprep.subr.mxu0 0.0
    %1257 = vmatpush1.msra.mxu0 %v1003
    %1258 = vmatprep.subr.mxu0 0.0
    %1259 = vmatpush1.msra.mxu0 %v1004
    %1260 = vmatprep.subr.mxu0 0.0
    %1261 = vmatpush1.msra.mxu0 0.0
    %1262 = vmatprep.subr.mxu0 0.0
    %1263 = vmatpush1.msra.mxu0 0.0
    %1264 = vmatprep.subr.mxu0 0.0
    %1265 = vmatpush1.msra.mxu0 0.0
    %1266 = vmatprep.subr.mxu0 0.0
    %1267 = vmatpush1.msra.mxu0 0.0
    %1268 = vmatprep.subr.mxu0 0.0
    %1269 = vmatpush1.msra.mxu0 0.0
    %1270 = vmatprep.subr.mxu0 0.0
    %1271 = vmatpush1.msra.mxu0 0.0
    %1272 = vmatprep.subr.mxu0 0.0
    %1273 = vmatpush1.msra.mxu0 0.0
    %1274 = vmatprep.subr.mxu0 0.0
    %1275 = vmatpush1.msra.mxu0 0.0
    %1276 = vmatprep.subr.mxu0 0.0
    %1277 = vmatpush1.msra.mxu0 0.0
    %1278 = vmatprep.subr.mxu0 0.0
    %1279 = vmatpush1.msra.mxu0 0.0
    %1280 = vmatprep.subr.mxu0 0.0
    %1281 = vmatpush1.msra.mxu0 0.0
    %1282 = vmatprep.subr.mxu0 0.0
    %1283 = vmatpush1.msra.mxu0 0.0
    %1284 = vmatprep.subr.mxu0 0.0
    %1285 = vmatpush1.msra.mxu0 0.0
    %1286 = vmatprep.subr.mxu0 0.0
    %1287 = vmatpush1.msra.mxu0 0.0
    %1288 = vmatprep.subr.mxu0 0.0
    %1289 = vmatpush1.msra.mxu0 0.0
    %1290 = vmatprep.subr.mxu0 0.0
    %1291 = vmatpush1.msra.mxu0 0.0
    %1292 = vmatprep.mubr.f32.mxu0 0.0
    %1293 = vmatmul.mubr.f32.gmra.mrb[0].mxu0 %v1225
    %v1294 = vpop.f32.mrb[0].mxu0
    %v1295 = vadd.f32 0.0, %v1294
    %v1296 = vpop.f32.mrb[0].mxu0
    %1297 = vdwg.mxu0
    %v1298 = vadd.f32 %v1227, %v1295
    %v1299 = vtanh.pop %v1298
    %1300 = vst [vmem:[%s458] sm:$0xff] %v1299
    %v1301 = vld [vmem:[%s533] sm:$0xff]
    %1302 = vmatprep.subr.mxu0 0.0
    %1303 = vmatpush1.msra.mxu0 %v989
    %1304 = vmatprep.subr.mxu0 0.0
    %1305 = vmatpush1.msra.mxu0 %v990
    %1306 = vmatprep.subr.mxu0 0.0
    %1307 = vmatpush1.msra.mxu0 %v991
    %1308 = vmatprep.subr.mxu0 0.0
    %1309 = vmatpush1.msra.mxu0 %v992
    %1310 = vmatprep.subr.mxu0 0.0
    %1311 = vmatpush1.msra.mxu0 %v993
    %1312 = vmatprep.subr.mxu0 0.0
    %1313 = vmatpush1.msra.mxu0 %v994
    %1314 = vmatprep.subr.mxu0 0.0
    %1315 = vmatpush1.msra.mxu0 %v995
    %1316 = vmatprep.subr.mxu0 0.0
    %1317 = vmatpush1.msra.mxu0 %v996
    %1318 = vmatprep.subr.mxu0 0.0
    %1319 = vmatpush1.msra.mxu0 %v997
    %1320 = vmatprep.subr.mxu0 0.0
    %1321 = vmatpush1.msra.mxu0 %v998
    %1322 = vmatprep.subr.mxu0 0.0
    %1323 = vmatpush1.msra.mxu0 %v999
    %1324 = vmatprep.subr.mxu0 0.0
    %1325 = vmatpush1.msra.mxu0 %v1000
    %1326 = vmatprep.subr.mxu0 0.0
    %1327 = vmatpush1.msra.mxu0 %v1001
    %1328 = vmatprep.subr.mxu0 0.0
    %1329 = vmatpush1.msra.mxu0 %v1002
    %1330 = vmatprep.subr.mxu0 0.0
    %1331 = vmatpush1.msra.mxu0 %v1003
    %1332 = vmatprep.subr.mxu0 0.0
    %1333 = vmatpush1.msra.mxu0 %v1004
    %1334 = vmatprep.subr.mxu0 0.0
    %1335 = vmatpush1.msra.mxu0 0.0
    %1336 = vmatprep.subr.mxu0 0.0
    %1337 = vmatpush1.msra.mxu0 0.0
    %1338 = vmatprep.subr.mxu0 0.0
    %1339 = vmatpush1.msra.mxu0 0.0
    %1340 = vmatprep.subr.mxu0 0.0
    %1341 = vmatpush1.msra.mxu0 0.0
    %1342 = vmatprep.subr.mxu0 0.0
    %1343 = vmatpush1.msra.mxu0 0.0
    %1344 = vmatprep.subr.mxu0 0.0
    %1345 = vmatpush1.msra.mxu0 0.0
    %1346 = vmatprep.subr.mxu0 0.0
    %1347 = vmatpush1.msra.mxu0 0.0
    %1348 = vmatprep.subr.mxu0 0.0
    %1349 = vmatpush1.msra.mxu0 0.0
    %1350 = vmatprep.subr.mxu0 0.0
    %1351 = vmatpush1.msra.mxu0 0.0
    %1352 = vmatprep.subr.mxu0 0.0
    %1353 = vmatpush1.msra.mxu0 0.0
    %1354 = vmatprep.subr.mxu0 0.0
    %1355 = vmatpush1.msra.mxu0 0.0
    %1356 = vmatprep.subr.mxu0 0.0
    %1357 = vmatpush1.msra.mxu0 0.0
    %1358 = vmatprep.subr.mxu0 0.0
    %1359 = vmatpush1.msra.mxu0 0.0
    %1360 = vmatprep.subr.mxu0 0.0
    %1361 = vmatpush1.msra.mxu0 0.0
    %1362 = vmatprep.subr.mxu0 0.0
    %1363 = vmatpush1.msra.mxu0 0.0
    %1364 = vmatprep.subr.mxu0 0.0
    %1365 = vmatpush1.msra.mxu0 0.0
    %1366 = vmatprep.mubr.f32.mxu0 0.0
    %1367 = vmatmul.mubr.f32.gmra.mrb[0].mxu0 %v1299
    %v1368 = vpop.f32.mrb[0].mxu0
    %v1369 = vadd.f32 0.0, %v1368
    %v1370 = vpop.f32.mrb[0].mxu0
    %1371 = vdwg.mxu0
    %v1372 = vadd.f32 %v1301, %v1369
    %v1373 = vtanh.pop %v1372
    %1374 = vst [vmem:[%s533] sm:$0xff] %v1373
    %v1375 = vld [vmem:[%s608] sm:$0xff]
    %1376 = vmatprep.subr.mxu0 0.0
    %1377 = vmatpush1.msra.mxu0 %v989
    %1378 = vmatprep.subr.mxu0 0.0
    %1379 = vmatpush1.msra.mxu0 %v990
    %1380 = vmatprep.subr.mxu0 0.0
    %1381 = vmatpush1.msra.mxu0 %v991
    %1382 = vmatprep.subr.mxu0 0.0
    %1383 = vmatpush1.msra.mxu0 %v992
    %1384 = vmatprep.subr.mxu0 0.0
    %1385 = vmatpush1.msra.mxu0 %v993
    %1386 = vmatprep.subr.mxu0 0.0
    %1387 = vmatpush1.msra.mxu0 %v994
    %1388 = vmatprep.subr.mxu0 0.0
    %1389 = vmatpush1.msra.mxu0 %v995
    %1390 = vmatprep.subr.mxu0 0.0
    %1391 = vmatpush1.msra.mxu0 %v996
    %1392 = vmatprep.subr.mxu0 0.0
    %1393 = vmatpush1.msra.mxu0 %v997
    %1394 = vmatprep.subr.mxu0 0.0
    %1395 = vmatpush1.msra.mxu0 %v998
    %1396 = vmatprep.subr.mxu0 0.0
    %1397 = vmatpush1.msra.mxu0 %v999
    %1398 = vmatprep.subr.mxu0 0.0
    %1399 = vmatpush1.msra.mxu0 %v1000
    %1400 = vmatprep.subr.mxu0 0.0
    %1401 = vmatpush1.msra.mxu0 %v1001
    %1402 = vmatprep.subr.mxu0 0.0
    %1403 = vmatpush1.msra.mxu0 %v1002
    %1404 = vmatprep.subr.mxu0 0.0
    %1405 = vmatpush1.msra.mxu0 %v1003
    %1406 = vmatprep.subr.mxu0 0.0
    %1407 = vmatpush1.msra.mxu0 %v1004
    %1408 = vmatprep.subr.mxu0 0.0
    %1409 = vmatpush1.msra.mxu0 0.0
    %1410 = vmatprep.subr.mxu0 0.0
    %1411 = vmatpush1.msra.mxu0 0.0
    %1412 = vmatprep.subr.mxu0 0.0
    %1413 = vmatpush1.msra.mxu0 0.0
    %1414 = vmatprep.subr.mxu0 0.0
    %1415 = vmatpush1.msra.mxu0 0.0
    %1416 = vmatprep.subr.mxu0 0.0
    %1417 = vmatpush1.msra.mxu0 0.0
    %1418 = vmatprep.subr.mxu0 0.0
    %1419 = vmatpush1.msra.mxu0 0.0
    %1420 = vmatprep.subr.mxu0 0.0
    %1421 = vmatpush1.msra.mxu0 0.0
    %1422 = vmatprep.subr.mxu0 0.0
    %1423 = vmatpush1.msra.mxu0 0.0
    %1424 = vmatprep.subr.mxu0 0.0
    %1425 = vmatpush1.msra.mxu0 0.0
    %1426 = vmatprep.subr.mxu0 0.0
    %1427 = vmatpush1.msra.mxu0 0.0
    %1428 = vmatprep.subr.mxu0 0.0
    %1429 = vmatpush1.msra.mxu0 0.0
    %1430 = vmatprep.subr.mxu0 0.0
    %1431 = vmatpush1.msra.mxu0 0.0
    %1432 = vmatprep.subr.mxu0 0.0
    %1433 = vmatpush1.msra.mxu0 0.0
    %1434 = vmatprep.subr.mxu0 0.0
    %1435 = vmatpush1.msra.mxu0 0.0
    %1436 = vmatprep.subr.mxu0 0.0
    %1437 = vmatpush1.msra.mxu0 0.0
    %1438 = vmatprep.subr.mxu0 0.0
    %1439 = vmatpush1.msra.mxu0 0.0
    %1440 = vmatprep.mubr.f32.mxu0 0.0
    %1441 = vmatmul.mubr.f32.gmra.mrb[0].mxu0 %v1373
    %v1442 = vpop.f32.mrb[0].mxu0
    %v1443 = vadd.f32 0.0, %v1442
    %v1444 = vpop.f32.mrb[0].mxu0
    %1445 = vdwg.mxu0
    %v1446 = vadd.f32 %v1375, %v1443
    %v1447 = vtanh.pop %v1446
    %1448 = vst [vmem:[%s608] sm:$0xff] %v1447
    %v1449 = vld [vmem:[%s683] sm:$0xff]
    %1450 = vmatprep.subr.mxu0 0.0
    %1451 = vmatpush1.msra.mxu0 %v989
    %1452 = vmatprep.subr.mxu0 0.0
    %1453 = vmatpush1.msra.mxu0 %v990
    %1454 = vmatprep.subr.mxu0 0.0
    %1455 = vmatpush1.msra.mxu0 %v991
    %1456 = vmatprep.subr.mxu0 0.0
    %1457 = vmatpush1.msra.mxu0 %v992
    %1458 = vmatprep.subr.mxu0 0.0
    %1459 = vmatpush1.msra.mxu0 %v993
    %1460 = vmatprep.subr.mxu0 0.0
    %1461 = vmatpush1.msra.mxu0 %v994
    %1462 = vmatprep.subr.mxu0 0.0
    %1463 = vmatpush1.msra.mxu0 %v995
    %1464 = vmatprep.subr.mxu0 0.0
    %1465 = vmatpush1.msra.mxu0 %v996
    %1466 = vmatprep.subr.mxu0 0.0
    %1467 = vmatpush1.msra.mxu0 %v997
    %1468 = vmatprep.subr.mxu0 0.0
    %1469 = vmatpush1.msra.mxu0 %v998
    %1470 = vmatprep.subr.mxu0 0.0
    %1471 = vmatpush1.msra.mxu0 %v999
    %1472 = vmatprep.subr.mxu0 0.0
    %1473 = vmatpush1.msra.mxu0 %v1000
    %1474 = vmatprep.subr.mxu0 0.0
    %1475 = vmatpush1.msra.mxu0 %v1001
    %1476 = vmatprep.subr.mxu0 0.0
    %1477 = vmatpush1.msra.mxu0 %v1002
    %1478 = vmatprep.subr.mxu0 0.0
    %1479 = vmatpush1.msra.mxu0 %v1003
    %1480 = vmatprep.subr.mxu0 0.0
    %1481 = vmatpush1.msra.mxu0 %v1004
    %1482 = vmatprep.subr.mxu0 0.0
    %1483 = vmatpush1.msra.mxu0 0.0
    %1484 = vmatprep.subr.mxu0 0.0
    %1485 = vmatpush1.msra.mxu0 0.0
    %1486 = vmatprep.subr.mxu0 0.0
    %1487 = vmatpush1.msra.mxu0 0.0
    %1488 = vmatprep.subr.mxu0 0.0
    %1489 = vmatpush1.msra.mxu0 0.0
    %1490 = vmatprep.subr.mxu0 0.0
    %1491 = vmatpush1.msra.mxu0 0.0
    %1492 = vmatprep.subr.mxu0 0.0
    %1493 = vmatpush1.msra.mxu0 0.0
    %1494 = vmatprep.subr.mxu0 0.0
    %1495 = vmatpush1.msra.mxu0 0.0
    %1496 = vmatprep.subr.mxu0 0.0
    %1497 = vmatpush1.msra.mxu0 0.0
    %1498 = vmatprep.subr.mxu0 0.0
    %1499 = vmatpush1.msra.mxu0 0.0
    %1500 = vmatprep.subr.mxu0 0.0
    %1501 = vmatpush1.msra.mxu0 0.0
    %1502 = vmatprep.subr.mxu0 0.0
    %1503 = vmatpush1.msra.mxu0 0.0
    %1504 = vmatprep.subr.mxu0 0.0
    %1505 = vmatpush1.msra.mxu0 0.0
    %1506 = vmatprep.subr.mxu0 0.0
    %1507 = vmatpush1.msra.mxu0 0.0
    %1508 = vmatprep.subr.mxu0 0.0
    %1509 = vmatpush1.msra.mxu0 0.0
    %1510 = vmatprep.subr.mxu0 0.0
    %1511 = vmatpush1.msra.mxu0 0.0
    %1512 = vmatprep.subr.mxu0 0.0
    %1513 = vmatpush1.msra.mxu0 0.0
    %1514 = vmatprep.mubr.f32.mxu0 0.0
    %1515 = vmatmul.mubr.f32.gmra.mrb[0].mxu0 %v1447
    %v1516 = vpop.f32.mrb[0].mxu0
    %v1517 = vadd.f32 0.0, %v1516
    %v1518 = vpop.f32.mrb[0].mxu0
    %1519 = vdwg.mxu0
    %v1520 = vadd.f32 %v1449, %v1517
    %v1521 = vtanh.pop %v1520
    %1522 = vst [vmem:[%s683] sm:$0xff] %v1521
    %v1523 = vld [vmem:[%s758] sm:$0xff]
    %1524 = vmatprep.subr.mxu0 0.0
    %1525 = vmatpush1.msra.mxu0 %v989
    %1526 = vmatprep.subr.mxu0 0.0
    %1527 = vmatpush1.msra.mxu0 %v990
    %1528 = vmatprep.subr.mxu0 0.0
    %1529 = vmatpush1.msra.mxu0 %v991
    %1530 = vmatprep.subr.mxu0 0.0
    %1531 = vmatpush1.msra.mxu0 %v992
    %1532 = vmatprep.subr.mxu0 0.0
    %1533 = vmatpush1.msra.mxu0 %v993
    %1534 = vmatprep.subr.mxu0 0.0
    %1535 = vmatpush1.msra.mxu0 %v994
    %1536 = vmatprep.subr.mxu0 0.0
    %1537 = vmatpush1.msra.mxu0 %v995
    %1538 = vmatprep.subr.mxu0 0.0
    %1539 = vmatpush1.msra.mxu0 %v996
    %1540 = vmatprep.subr.mxu0 0.0
    %1541 = vmatpush1.msra.mxu0 %v997
    %1542 = vmatprep.subr.mxu0 0.0
    %1543 = vmatpush1.msra.mxu0 %v998
    %1544 = vmatprep.subr.mxu0 0.0
    %1545 = vmatpush1.msra.mxu0 %v999
    %1546 = vmatprep.subr.mxu0 0.0
    %1547 = vmatpush1.msra.mxu0 %v1000
    %1548 = vmatprep.subr.mxu0 0.0
    %1549 = vmatpush1.msra.mxu0 %v1001
    %1550 = vmatprep.subr.mxu0 0.0
    %1551 = vmatpush1.msra.mxu0 %v1002
    %1552 = vmatprep.subr.mxu0 0.0
    %1553 = vmatpush1.msra.mxu0 %v1003
    %1554 = vmatprep.subr.mxu0 0.0
    %1555 = vmatpush1.msra.mxu0 %v1004
    %1556 = vmatprep.subr.mxu0 0.0
    %1557 = vmatpush1.msra.mxu0 0.0
    %1558 = vmatprep.subr.mxu0 0.0
    %1559 = vmatpush1.msra.mxu0 0.0
    %1560 = vmatprep.subr.mxu0 0.0
    %1561 = vmatpush1.msra.mxu0 0.0
    %1562 = vmatprep.subr.mxu0 0.0
    %1563 = vmatpush1.msra.mxu0 0.0
    %1564 = vmatprep.subr.mxu0 0.0
    %1565 = vmatpush1.msra.mxu0 0.0
    %1566 = vmatprep.subr.mxu0 0.0
    %1567 = vmatpush1.msra.mxu0 0.0
    %1568 = vmatprep.subr.mxu0 0.0
    %1569 = vmatpush1.msra.mxu0 0.0
    %1570 = vmatprep.subr.mxu0 0.0
    %1571 = vmatpush1.msra.mxu0 0.0
    %1572 = vmatprep.subr.mxu0 0.0
    %1573 = vmatpush1.msra.mxu0 0.0
    %1574 = vmatprep.subr.mxu0 0.0
    %1575 = vmatpush1.msra.mxu0 0.0
    %1576 = vmatprep.subr.mxu0 0.0
    %1577 = vmatpush1.msra.mxu0 0.0
    %1578 = vmatprep.subr.mxu0 0.0
    %1579 = vmatpush1.msra.mxu0 0.0
    %1580 = vmatprep.subr.mxu0 0.0
    %1581 = vmatpush1.msra.mxu0 0.0
    %1582 = vmatprep.subr.mxu0 0.0
    %1583 = vmatpush1.msra.mxu0 0.0
    %1584 = vmatprep.subr.mxu0 0.0
    %1585 = vmatpush1.msra.mxu0 0.0
    %1586 = vmatprep.subr.mxu0 0.0
    %1587 = vmatpush1.msra.mxu0 0.0
    %1588 = vmatprep.mubr.f32.mxu0 0.0
    %1589 = vmatmul.mubr.f32.gmra.mrb[0].mxu0 %v1521
    %v1590 = vpop.f32.mrb[0].mxu0
    %v1591 = vadd.f32 0.0, %v1590
    %v1592 = vpop.f32.mrb[0].mxu0
    %1593 = vdwg.mxu0
    %v1594 = vadd.f32 %v1523, %v1591
    %v1595 = vtanh.pop %v1594
    %1596 = vst [vmem:[%s758] sm:$0xff] %v1595
    %v1597 = vld [vmem:[#allocation2] sm:$0xff]
    %v1598 = vld [vmem:[#allocation2 + $0x8] sm:$0xff]
    %v1599 = vld [vmem:[#allocation2 + $0x10] sm:$0xff]
    %v1600 = vld [vmem:[#allocation2 + $0x18] sm:$0xff]
    %v1601 = vld [vmem:[#allocation2 + $0x20] sm:$0xff]
    %v1602 = vld [vmem:[#allocation2 + $0x28] sm:$0xff]
    %v1603 = vld [vmem:[#allocation2 + $0x30] sm:$0xff]
    %v1604 = vld [vmem:[#allocation2 + $0x38] sm:$0xff]
    %v1605 = vpack.c.bf16 %v1598, %v1597
    %v1606 = vpack.c.bf16 %v1600, %v1599
    %v1607 = vpack.c.bf16 %v1602, %v1601
    %v1608 = vpack.c.bf16 %v1604, %v1603
    %v1609 = vld [vmem:[%s7] sm:$0xf]
    %v1610 = vld [vmem:[%s7 + $0x4] sm:$0xf]
    %v1611 = vld [vmem:[%s7 + $0x8] sm:$0xf]
    %v1612 = vld [vmem:[%s7 + $0xc] sm:$0xf]
    %v1613 = vld [vmem:[%s7 + $0x10] sm:$0xf]
    %v1614 = vld [vmem:[%s7 + $0x14] sm:$0xf]
    %v1615 = vld [vmem:[%s7 + $0x18] sm:$0xf]
    %v1616 = vld [vmem:[%s7 + $0x1c] sm:$0xf]
    %v1617 = vld [vmem:[%s7 + $0x20] sm:$0xf]
    %v1618 = vld [vmem:[%s7 + $0x24] sm:$0xf]
    %v1619 = vld [vmem:[%s7 + $0x28] sm:$0xf]
    %v1620 = vld [vmem:[%s7 + $0x2c] sm:$0xf]
    %v1621 = vld [vmem:[%s7 + $0x30] sm:$0xf]
    %v1622 = vld [vmem:[%s7 + $0x34] sm:$0xf]
    %v1623 = vld [vmem:[%s7 + $0x38] sm:$0xf]
    %v1624 = vld [vmem:[%s7 + $0x3c] sm:$0xf]
    %v1625 = vld [vmem:[%s8] sm:$0x1]
    %v1627 = vlaneseq
    %v1628 = vshrl.u32 %v1627, 7
    %v1629 = vsub.s32 0, %v1628
    %v1630 = vrot.slane %v1625, %v1629
    %v1648 = vunpack.c.l.b16 %v1609
    %v1649 = vunpack.c.l.b16 %v1610
    %v1650 = vunpack.c.l.b16 %v1611
    %v1651 = vunpack.c.l.b16 %v1612
    %v1652 = vunpack.c.l.b16 %v1613
    %v1653 = vunpack.c.l.b16 %v1614
    %v1654 = vunpack.c.l.b16 %v1615
    %v1655 = vunpack.c.l.b16 %v1616
    %v1656 = vunpack.c.l.b16 %v1617
    %v1657 = vunpack.c.l.b16 %v1618
    %v1658 = vunpack.c.l.b16 %v1619
    %v1659 = vunpack.c.l.b16 %v1620
    %v1660 = vunpack.c.l.b16 %v1621
    %v1661 = vunpack.c.l.b16 %v1622
    %v1662 = vunpack.c.l.b16 %v1623
    %v1663 = vunpack.c.l.b16 %v1624
    %v1664 = vpack.c.b16 %v1649, %v1648
    %v1665 = vpack.c.b16 %v1651, %v1650
    %v1666 = vpack.c.b16 %v1653, %v1652
    %v1667 = vpack.c.b16 %v1655, %v1654
    %v1668 = vpack.c.b16 %v1657, %v1656
    %v1669 = vpack.c.b16 %v1659, %v1658
    %v1670 = vpack.c.b16 %v1661, %v1660
    %v1671 = vpack.c.b16 %v1663, %v1662
    %1680 = vmatprep.subr.bf16.mxu0 0
    %1681 = vmatpush1.bf16.msra.mxu0 %v1664
    %1682 = vmatprep.subr.bf16.mxu0 0
    %1683 = vmatpush1.bf16.msra.mxu0 %v1665
    %1684 = vmatprep.subr.bf16.mxu0 0
    %1685 = vmatpush1.bf16.msra.mxu0 %v1666
    %1686 = vmatprep.subr.bf16.mxu0 0
    %1687 = vmatpush1.bf16.msra.mxu0 %v1667
    %1688 = vmatprep.subr.bf16.mxu0 0
    %1689 = vmatpush1.bf16.msra.mxu0 %v1668
    %1690 = vmatprep.subr.bf16.mxu0 0
    %1691 = vmatpush1.bf16.msra.mxu0 %v1669
    %1692 = vmatprep.subr.bf16.mxu0 0
    %1693 = vmatpush1.bf16.msra.mxu0 %v1670
    %1694 = vmatprep.subr.bf16.mxu0 0
    %1695 = vmatpush1.bf16.msra.mxu0 %v1671
    %1696 = vmatprep.subr.bf16.mxu0 0
    %1697 = vmatpush1.bf16.msra.mxu0 0
    %1698 = vmatprep.subr.bf16.mxu0 0
    %1699 = vmatpush1.bf16.msra.mxu0 0
    %1700 = vmatprep.subr.bf16.mxu0 0
    %1701 = vmatpush1.bf16.msra.mxu0 0
    %1702 = vmatprep.subr.bf16.mxu0 0
    %1703 = vmatpush1.bf16.msra.mxu0 0
    %1704 = vmatprep.subr.bf16.mxu0 0
    %1705 = vmatpush1.bf16.msra.mxu0 0
    %1706 = vmatprep.subr.bf16.mxu0 0
    %1707 = vmatpush1.bf16.msra.mxu0 0
    %1708 = vmatprep.subr.bf16.mxu0 0
    %1709 = vmatpush1.bf16.msra.mxu0 0
    %1710 = vmatprep.subr.bf16.mxu0 0
    %1711 = vmatpush1.bf16.msra.mxu0 0
    %1712 = vmatprep.mubr.bf16.mxu0 0
    %1713 = vmatmul.mubr.bf16.gmra.mrb[0].mxu0 %v1605
    %v1714 = vpop.f32.mrb[0].mxu0
    %v1715 = vadd.f32 %v1630, %v1714
    %v1716 = vpop.f32.mrb[0].mxu0
    %v1717 = vpop.f32.mrb[0].mxu0
    %v1718 = vadd.f32 %v1630, %v1717
    %v1719 = vpop.f32.mrb[0].mxu0
    %1720 = vmatprep.mubr.bf16.mxu0 0
    %1721 = vmatmul.mubr.bf16.gmra.mrb[0].mxu0 %v1606
    %v1722 = vpop.f32.mrb[0].mxu0
    %v1723 = vadd.f32 %v1630, %v1722
    %v1724 = vpop.f32.mrb[0].mxu0
    %v1725 = vpop.f32.mrb[0].mxu0
    %v1726 = vadd.f32 %v1630, %v1725
    %v1727 = vpop.f32.mrb[0].mxu0
    %1728 = vmatprep.mubr.bf16.mxu0 0
    %1729 = vmatmul.mubr.bf16.gmra.mrb[0].mxu0 %v1607
    %v1730 = vpop.f32.mrb[0].mxu0
    %v1731 = vadd.f32 %v1630, %v1730
    %v1732 = vpop.f32.mrb[0].mxu0
    %v1733 = vpop.f32.mrb[0].mxu0
    %v1734 = vadd.f32 %v1630, %v1733
    %v1735 = vpop.f32.mrb[0].mxu0
    %1736 = vmatprep.mubr.bf16.mxu0 0
    %1737 = vmatmul.mubr.bf16.gmra.mrb[0].mxu0 %v1608
    %v1738 = vpop.f32.mrb[0].mxu0
    %v1739 = vadd.f32 %v1630, %v1738
    %v1740 = vpop.f32.mrb[0].mxu0
    %v1741 = vpop.f32.mrb[0].mxu0
    %v1742 = vadd.f32 %v1630, %v1741
    %v1743 = vpop.f32.mrb[0].mxu0
    %1744 = vdwg.mxu0
    %1745 = vst [vmem:[#allocation11] sm:$0xff] %v1715
    %1746 = vst [vmem:[#allocation11 + $0x8] sm:$0xff] %v1718
    %1747 = vst [vmem:[#allocation11 + $0x10] sm:$0xff] %v1723
    %1748 = vst [vmem:[#allocation11 + $0x18] sm:$0xff] %v1726
    %1749 = vst [vmem:[#allocation11 + $0x20] sm:$0xff] %v1731
    %1750 = vst [vmem:[#allocation11 + $0x28] sm:$0xff] %v1734
    %1751 = vst [vmem:[#allocation11 + $0x30] sm:$0xff] %v1739
    %1752 = vst [vmem:[#allocation11 + $0x38] sm:$0xff] %v1742
    // Predicated region
    $region54: #{tpu_custom_call.1} parent=1 // pred_check
      _
    $region55: #{tpu_custom_call.1} parent=1 // pred_check_branch
      %1754 = sbr.rel (0) target = $region57
    $region56: #{tpu_custom_call.1} parent=1 // pred_region
      %s1756 = ssub.s32 1024, 1024
      %1757 = vsyncadd [#allocation5], %s1756
      %s1758 = sshll.u32 [#allocation11], 4
      %s1759 = int_to_ptr.vmem [resolvable:$true] %s1758
      %1764 = dma.vmem_to_hbm [thread:$0]  %s1759, 1024, %s9, [#allocation5], 128, 128, 8
    $region57: #{tpu_custom_call.1} parent=1 // pred_fallthru
      _
    // Predicated region
    $region58: #{tpu_custom_call.1} parent=1 // pred_check
      _
    $region59: #{tpu_custom_call.1} parent=1 // pred_check_branch
      %1766 = sbr.rel (0) target = $region61
    $region60: #{tpu_custom_call.1} parent=1 // pred_region
      %1767 = dma.done [#allocation5], 1024
    $region61: #{tpu_custom_call.1} parent=1 // pred_fallthru
      _
    %1768 = vsyncpa [#allocation4], 1
    %1769 = vsyncpa [#allocation7], 1
    %1770 = vsyncpa [#allocation10], 1
    %1771 = vsyncpa [#allocation5], 1

</llo_original>
